<compile_context>
chip_gen: v6e
topology: v6e:2x2x1
jax: 0.10.0
libtpu: 0.0.40
codegen_flags: <defaults>
</compile_context>

<pallas_src>
import jax
import jax.numpy as jnp
from jax.experimental import pallas as pl
from jax.experimental.pallas import tpu as pltpu


def _round_up(v: int, m: int) -> int:
    return (v + m - 1) // m * m


# ---------------------------------------------------------------------------
# Pallas kernel: one Jacobi order L (grid axis 1) for one F tile (grid axis 0)
# ---------------------------------------------------------------------------
def _poly_jacobi_kernel(coef_ref, adj_ref, x_ref, out_ref,
                        curr_ref, prev_ref, mm_ref):
    # coef_ref : SMEM ((depth+1)*3,) f32 — [A_L, B_L, C_L] interleaved (C_1 = 0)
    # adj_ref  : VMEM (N_pad, N_pad) matmul dtype — resident, single-buffered
    # x_ref    : VMEM (N_pad, TF) f32 — input feature tile (read only at L==0)
    # out_ref  : VMEM (1, N_pad, TF) store dtype — this order's output block
    # curr_ref : VMEM (N_pad, TF) f32 — x_{L-1} carry
    # prev_ref : VMEM (N_pad, TF) f32 — x_{L-2} carry
    # mm_ref   : VMEM (N_pad, TF) matmul dtype — x_{L-1} as the next MXU operand
    L = pl.program_id(1)

    @pl.when(L == 0)
    def _init():
        x0 = x_ref[...].astype(jnp.float32)
        curr_ref[...] = x0
        prev_ref[...] = jnp.zeros_like(prev_ref)      # C_1 == 0 -> safe at L==1
        mm_ref[...] = x0.astype(mm_ref.dtype)
        out_ref[0] = x0.astype(out_ref.dtype)

    @pl.when(L > 0)
    def _step():
        a = coef_ref[3 * L + 0]
        b = coef_ref[3 * L + 1]
        c = coef_ref[3 * L + 2]
        curr = curr_ref[...]
        # MXU matmul in adj's dtype (bf16 fast path); strictly f32 accumulate.
        ax = jnp.dot(adj_ref[...], mm_ref[...],
                     preferred_element_type=jnp.float32)
        nx = a * ax + b * curr + c * prev_ref[...]    # 3-term combine in f32
        prev_ref[...] = curr
        curr_ref[...] = nx
        nx_mm = nx.astype(mm_ref.dtype)
        mm_ref[...] = nx_mm                            # next order's MXU operand
        if out_ref.dtype == mm_ref.dtype:
            out_ref[0] = nx_mm                         # reuse the single cast
        else:
            out_ref[0] = nx.astype(out_ref.dtype)


# ---------------------------------------------------------------------------
# Glue: buildAdj (dense), Jacobi recurrence coefficients, tiling heuristics
# ---------------------------------------------------------------------------
def build_adj_dense(edge_index, edge_weight, n_node, aggr="gcn"):
    row = edge_index[0]
    col = edge_index[1]
    deg = jnp.zeros((n_node,), jnp.float32).at[row].add(1.0)
    deg = jnp.where(deg < 0.5, deg + 1.0, deg)
    if aggr == "mean":
        val = (1.0 / deg)[row] * edge_weight
    elif aggr == "sum":
        val = edge_weight
    elif aggr == "gcn":
        dinv = jnp.power(deg, -0.5)
        val = dinv[row] * edge_weight * dinv[col]
    else:
        raise NotImplementedError(aggr)
    # coalesce (duplicate edges summed) == scatter-add into dense matrix
    adj = jnp.zeros((n_node, n_node), jnp.float32).at[row, col].add(val)
    return adj


def jacobi_coefs_flat(pe_alphas, depth, basealpha=1.0, a=1.0, b=1.0,
                      l=-1.0, r=1.0):
    """Flat (3*(depth+1),) coefficients so that
       x_L = A_L*(adj@x_{L-1}) + B_L*x_{L-1} + C_L*x_{L-2}."""
    alphas = basealpha * jnp.tanh(pe_alphas.astype(jnp.float32))  # (depth+1,)
    rows = [jnp.zeros((3,), jnp.float32)]  # L = 0: unused
    if depth >= 1:
        coef1 = (a - b) / 2.0 - (a + b + 2.0) / 2.0 * (l + r) / (r - l)
        coef2 = (a + b + 2.0) / (r - l)
        rows.append(jnp.stack([coef2 * alphas[0], coef1 * alphas[0],
                               jnp.float32(0.0)]))
    for L in range(2, depth + 1):
        coef_l = 2.0 * L * (L + a + b) * (2.0 * L - 2.0 + a + b)
        coef_lm1_1 = (2.0 * L + a + b - 1.0) * (2.0 * L + a + b) * (2.0 * L + a + b - 2.0)
        coef_lm1_2 = (2.0 * L + a + b - 1.0) * (a ** 2 - b ** 2)
        coef_lm2 = 2.0 * (L - 1.0 + a) * (L - 1.0 + b) * (2.0 * L + a + b)
        tmp1 = alphas[L - 1] * (coef_lm1_1 / coef_l)
        tmp2 = alphas[L - 1] * (coef_lm1_2 / coef_l)
        tmp3 = alphas[L - 1] * alphas[L - 2] * (coef_lm2 / coef_l)
        tmp1_2 = tmp1 * (2.0 / (r - l))
        tmp2_2 = tmp1 * ((r + l) / (r - l)) + tmp2
        rows.append(jnp.stack([tmp1_2, -tmp2_2, -tmp3]))
    return jnp.stack(rows, axis=0).reshape(-1)  # (3*(depth+1),)


def _vmem_capacity_bytes() -> int:
    # Generation-aware: 128 MiB on v5e/v6e, 64 MiB per TensorCore on v7x.
    try:
        return int(pltpu.get_tpu_info().vmem_capacity_bytes)
    except Exception:
        return 64 * 1024 * 1024   # conservative (v7x-sized) fallback


def _tile_vmem_bytes(n_pad, tf, mm_bytes, store_bytes):
    return (2 * n_pad * tf * 4               # x tile (double-buffered, f32)
            + 2 * n_pad * tf * store_bytes   # out tile (double-buffered)
            + 2 * n_pad * tf * 4             # curr + prev f32 carries (scratch)
            + n_pad * tf * mm_bytes          # MXU-operand carry (scratch)
            + 4 * n_pad * tf * 4)            # working values / spill headroom


def _select_tile_f(f_pad, n_pad, mm_bytes, store_bytes, vmem_budget):
    cands = [c for c in (512, 256, 128) if c <= f_pad and f_pad % c == 0]
    if not cands:
        cands = [f_pad]
    # Prefer >= 2 F tiles so the "parallel" axis can span both TensorCores on
    # v7x; within that, largest tile first to amortize per-grid-step overhead.
    ordered = ([c for c in cands if f_pad // c >= 2]
               + [c for c in cands if f_pad // c < 2])
    adj_bytes = n_pad * n_pad * mm_bytes            # single-buffered adjacency
    for tf in ordered:
        if adj_bytes + _tile_vmem_bytes(n_pad, tf, mm_bytes, store_bytes) <= vmem_budget:
            return tf
    return min(cands)


# ---------------------------------------------------------------------------
# Wrapper
# ---------------------------------------------------------------------------
def poly_conv_frame(x, edge_index, edge_attr, pe_alphas, depth=10, aggr="gcn",
                    basealpha=1.0, matmul_dtype=jnp.bfloat16, store_dtype=None,
                    order_first=False, tf=None):
    """PolyConvFrame(JacobiConv) forward. Returns (N, depth+1, F) in x.dtype,
    or the kernel-native (depth+1, N, F) layout when order_first=True."""
    n_node, feat = x.shape
    final_dtype = x.dtype
    if store_dtype is None:
        # bf16 HBM writeback on the fast path; f32 when exactness is requested.
        # NOTE: for large depth or |alpha|->1, pass matmul_dtype=jnp.float32.
        store_dtype = (jnp.bfloat16
                       if jnp.dtype(matmul_dtype).itemsize < 4 else jnp.float32)

    adj = build_adj_dense(edge_index, edge_attr, n_node, aggr)
    coefs = jacobi_coefs_flat(pe_alphas, depth, basealpha)

    # MXU / lane alignment: N (contraction + adj lane axis) and F (lane axis of
    # x / out) both padded to multiples of 128.
    n_pad = _round_up(n_node, 128)
    f_pad = _round_up(feat, 128)
    x_p = jnp.pad(x.astype(jnp.float32),
                  ((0, n_pad - n_node), (0, f_pad - feat)))
    adj_p = jnp.pad(adj, ((0, n_pad - n_node), (0, n_pad - n_node)))
    adj_p = adj_p.astype(matmul_dtype)   # bf16 MXU path; f32 accumulate in-kernel

    mm_bytes = jnp.dtype(matmul_dtype).itemsize
    store_bytes = jnp.dtype(store_dtype).itemsize

    vmem_budget = int(_vmem_capacity_bytes() * 0.9)   # headroom for Mosaic
    if tf is None:
        tf = _select_tile_f(f_pad, n_pad, mm_bytes, store_bytes, vmem_budget)
    else:
        tf = max(128, min(_round_up(tf, 128), f_pad))
        if f_pad % tf != 0:
            tf = 128
    grid = (f_pad // tf, depth + 1)

    needed = (n_pad * n_pad * mm_bytes
              + _tile_vmem_bytes(n_pad, tf, mm_bytes, store_bytes))
    vmem_limit = int(min(vmem_budget, max(needed + (4 << 20), 32 << 20)))

    cost = pl.CostEstimate(
        flops=2 * depth * n_pad * n_pad * f_pad,
        transcendentals=0,
        bytes_accessed=(n_pad * n_pad * mm_bytes                      # adj
                        + n_pad * f_pad * 4                           # x
                        + (depth + 1) * n_pad * f_pad * store_bytes)  # out
    )

    def _call(single_buffer_adj):
        adj_kwargs = {}
        if single_buffer_adj:
            # Constant index map -> the second pipeline buffer is pure waste;
            # single-buffering halves the resident adjacency footprint.
            adj_kwargs["pipeline_mode"] = pl.Buffered(1)
        return pl.pallas_call(
            _poly_jacobi_kernel,
            out_shape=jax.ShapeDtypeStruct((depth + 1, n_pad, f_pad),
                                           store_dtype),
            grid=grid,
            in_specs=[
                pl.BlockSpec(memory_space=pltpu.MemorySpace.SMEM),   # coefs
                pl.BlockSpec((n_pad, n_pad), lambda f, L: (0, 0),
                             **adj_kwargs),                          # adj
                pl.BlockSpec((n_pad, tf), lambda f, L: (0, f)),      # x tile
            ],
            out_specs=pl.BlockSpec((1, n_pad, tf), lambda f, L: (L, 0, f)),
            scratch_shapes=[
                pltpu.VMEM((n_pad, tf), jnp.float32),   # curr: x_{L-1} (f32)
                pltpu.VMEM((n_pad, tf), jnp.float32),   # prev: x_{L-2} (f32)
                pltpu.VMEM((n_pad, tf), matmul_dtype),  # mm:   x_{L-1} (MXU operand)
            ],
            compiler_params=pltpu.CompilerParams(
                dimension_semantics=("parallel", "arbitrary"),
                vmem_limit_bytes=vmem_limit,
            ),
            cost_estimate=cost,
        )(coefs, adj_p, x_p)

    try:
        out = _call(True)
    except Exception:
        # Fallback for jax builds without BlockSpec pipeline_mode support.
        out = _call(False)

    if order_first:
        # Kernel-native layout; skips the transpose HBM pass entirely.
        return out[:, :n_node, :feat].astype(final_dtype)
    # torch: cat([x_L.unsqueeze(1)], dim=1) -> (N, depth+1, F).
    # Transpose + unpad + upcast fuse into one XLA copy that *reads* the
    # narrow store_dtype (bf16) kernel output.
    out = jnp.transpose(out, (1, 0, 2))[:n_node, :, :feat]
    return out.astype(final_dtype)


# Pure-JAX reference for correctness checking (f32 math, no Pallas).
def poly_conv_frame_ref(x, edge_index, edge_attr, pe_alphas,
                        depth=10, aggr="gcn", basealpha=1.0):
    n_node, _ = x.shape
    adj = build_adj_dense(edge_index, edge_attr, n_node, aggr)
    coefs = jacobi_coefs_flat(pe_alphas, depth, basealpha)
    xs = [x.astype(jnp.float32)]
    prev = jnp.zeros_like(xs[0])
    curr = xs[0]
    for L in range(1, depth + 1):
        nx = (coefs[3 * L + 0] * (adj @ curr)
              + coefs[3 * L + 1] * curr
              + coefs[3 * L + 2] * prev)
        xs.append(nx)
        prev, curr = curr, nx
    return jnp.stack(xs, axis=1)  # (N, depth+1, F)


if __name__ == "__main__":
    key = jax.random.PRNGKey(0)
    k_x, k_ei, k_ew, k_al = jax.random.split(key, 4)

    n_node, feat, depth, n_edge = 32, 16, 10, 96

    x = jax.random.normal(k_x, (n_node, feat), jnp.float32)
    edge_index = jax.random.randint(k_ei, (2, n_edge), 0, n_node, jnp.int32)
    edge_attr = jax.random.uniform(k_ew, (n_edge,), jnp.float32, 0.5, 1.5)
    pe_alphas = 0.5 * jax.random.normal(k_al, (depth + 1,), jnp.float32)

    ref = poly_conv_frame_ref(x, edge_index, edge_attr, pe_alphas, depth=depth)

    # Exactness check of the kernel structure: f32 matmul + f32 store path.
    out_f32 = poly_conv_frame(x, edge_index, edge_attr, pe_alphas, depth=depth,
                              matmul_dtype=jnp.float32)
    out_f32 = jax.block_until_ready(out_f32)
    assert out_f32.shape == (n_node, depth + 1, feat), out_f32.shape
    assert jnp.allclose(out_f32, ref, rtol=1e-4, atol=1e-4), \
        float(jnp.max(jnp.abs(out_f32 - ref)))

    # Default fast path: bf16 adjacency on the MXU + bf16 HBM writeback,
    # f32 carries/accumulate (tolerance loosened for bf16 rounding compounded
    # over depth orders).
    out = poly_conv_frame(x, edge_index, edge_attr, pe_alphas, depth=depth)
    out = jax.block_until_ready(out)
    assert out.shape == (n_node, depth + 1, feat), out.shape
    assert out.dtype == x.dtype, out.dtype
    assert jnp.allclose(out, ref, rtol=5e-2, atol=5e-2), \
        float(jnp.max(jnp.abs(out - ref)))

    print("KERNEL_OK")
</pallas_src>

<mosaic_0001>
module attributes {stable_mosaic.version = 11 : i64} {
  func.func @_poly_jacobi_kernel(%arg0: i32, %arg1: i32, %arg2: memref<33xf32, #tpu.memory_space<smem>>, %arg3: memref<128x128xf32, #tpu.memory_space<vmem>>, %arg4: memref<128x128xf32, #tpu.memory_space<vmem>>, %arg5: memref<1x128x128xf32, #tpu.memory_space<vmem>>, %arg6: memref<128x128xf32, #tpu.memory_space<vmem>>, %arg7: memref<128x128xf32, #tpu.memory_space<vmem>>, %arg8: memref<128x128xf32, #tpu.memory_space<vmem>>) attributes {dimension_semantics = [#tpu.dimension_semantics<parallel>, #tpu.dimension_semantics<arbitrary>], iteration_bounds = array<i64: 1, 11>, scalar_prefetch = 0 : i64, scratch_operands = 3 : i64, tpu.core_type = #tpu.core_type<tc>, window_params = [{transform_indices = @transform_0, window_bounds = array<i64: 33>}, {pipeline_mode = #tpu.pipeline_mode<synchronous>, transform_indices = @transform_1, window_bounds = array<i64: 128, 128>}, {transform_indices = @transform_2, window_bounds = array<i64: 128, 128>}, {transform_indices = @transform_3, window_bounds = array<i64: 1, 128, 128>}]} {
    %c0_i32 = arith.constant 0 : i32
    %0 = arith.cmpi eq, %arg1, %c0_i32 : i32
    %1 = arith.extui %0 : i1 to i32
    %c0_i32_0 = arith.constant 0 : i32
    %2 = arith.cmpi ne, %1, %c0_i32_0 : i32
    scf.if %2 {
      %c0 = arith.constant 0 : index
      %c0_3 = arith.constant 0 : index
      %6 = vector.load %arg4[%c0, %c0_3] : memref<128x128xf32, #tpu.memory_space<vmem>>, vector<128x128xf32>
      %c0_4 = arith.constant 0 : index
      %c0_5 = arith.constant 0 : index
      %7 = vector.load %arg6[%c0_4, %c0_5] : memref<128x128xf32, #tpu.memory_space<vmem>>, vector<128x128xf32>
      tpu.vector_store %arg6[%c0_4, %c0_5], %6 {strides = array<i32>} : memref<128x128xf32, #tpu.memory_space<vmem>>, vector<128x128xf32>,
      %cst = arith.constant 0.000000e+00 : f32
      %8 = vector.broadcast %cst : f32 to vector<128x128xf32>
      %c0_6 = arith.constant 0 : index
      %c0_7 = arith.constant 0 : index
      %9 = vector.load %arg7[%c0_6, %c0_7] : memref<128x128xf32, #tpu.memory_space<vmem>>, vector<128x128xf32>
      tpu.vector_store %arg7[%c0_6, %c0_7], %8 {strides = array<i32>} : memref<128x128xf32, #tpu.memory_space<vmem>>, vector<128x128xf32>,
      %c0_8 = arith.constant 0 : index
      %c0_9 = arith.constant 0 : index
      %10 = vector.load %arg8[%c0_8, %c0_9] : memref<128x128xf32, #tpu.memory_space<vmem>>, vector<128x128xf32>
      tpu.vector_store %arg8[%c0_8, %c0_9], %6 {strides = array<i32>} : memref<128x128xf32, #tpu.memory_space<vmem>>, vector<128x128xf32>,
      %c0_10 = arith.constant 0 : index
      %c0_11 = arith.constant 0 : index
      %c0_12 = arith.constant 0 : index
      %11 = vector.load %arg5[%c0_10, %c0_11, %c0_12] : memref<1x128x128xf32, #tpu.memory_space<vmem>>, vector<1x128x128xf32>
      %12 = vector.shape_cast %11 : vector<1x128x128xf32> to vector<128x128xf32>
      %13 = vector.shape_cast %6 : vector<128x128xf32> to vector<1x128x128xf32>
      tpu.vector_store %arg5[%c0_10, %c0_11, %c0_12], %13 {strides = array<i32>} : memref<1x128x128xf32, #tpu.memory_space<vmem>>, vector<1x128x128xf32>,
    } else {
    }
    %c0_i32_1 = arith.constant 0 : i32
    %3 = arith.cmpi sgt, %arg1, %c0_i32_1 : i32
    %4 = arith.extui %3 : i1 to i32
    %c0_i32_2 = arith.constant 0 : i32
    %5 = arith.cmpi ne, %4, %c0_i32_2 : i32
    scf.if %5 {
      %c3_i32 = arith.constant 3 : i32
      %6 = arith.muli %c3_i32, %arg1 : i32
      %c0_i32_3 = arith.constant 0 : i32
      %7 = arith.addi %6, %c0_i32_3 : i32
      %8 = arith.index_cast %7 : i32 to index
      %9 = memref.load %arg2[%8] : memref<33xf32, #tpu.memory_space<smem>>
      %c3_i32_4 = arith.constant 3 : i32
      %10 = arith.muli %c3_i32_4, %arg1 : i32
      %c1_i32 = arith.constant 1 : i32
      %11 = arith.addi %10, %c1_i32 : i32
      %12 = arith.index_cast %11 : i32 to index
      %13 = memref.load %arg2[%12] : memref<33xf32, #tpu.memory_space<smem>>
      %c3_i32_5 = arith.constant 3 : i32
      %14 = arith.muli %c3_i32_5, %arg1 : i32
      %c2_i32 = arith.constant 2 : i32
      %15 = arith.addi %14, %c2_i32 : i32
      %16 = arith.index_cast %15 : i32 to index
      %17 = memref.load %arg2[%16] : memref<33xf32, #tpu.memory_space<smem>>
      %c0 = arith.constant 0 : index
      %c0_6 = arith.constant 0 : index
      %18 = vector.load %arg6[%c0, %c0_6] : memref<128x128xf32, #tpu.memory_space<vmem>>, vector<128x128xf32>
      %c0_7 = arith.constant 0 : index
      %c0_8 = arith.constant 0 : index
      %19 = vector.load %arg3[%c0_7, %c0_8] : memref<128x128xf32, #tpu.memory_space<vmem>>, vector<128x128xf32>
      %c0_9 = arith.constant 0 : index
      %c0_10 = arith.constant 0 : index
      %20 = vector.load %arg8[%c0_9, %c0_10] : memref<128x128xf32, #tpu.memory_space<vmem>>, vector<128x128xf32>
      %cst = arith.constant dense<0.000000e+00> : vector<128x128xf32>
      %21 = tpu.matmul %19, %20, %cst {dimension_numbers = #tpu.dot_dimension_numbers<[1], [0], [0], [1], [0, 0, 1, 1], [], []>} : vector<128x128xf32>, vector<128x128xf32>, vector<128x128xf32> -> vector<128x128xf32>
      %22 = vector.broadcast %9 : f32 to vector<128x128xf32>
      %23 = arith.mulf %22, %21 : vector<128x128xf32>
      %24 = vector.broadcast %13 : f32 to vector<128x128xf32>
      %25 = arith.mulf %24, %18 : vector<128x128xf32>
      %26 = arith.addf %23, %25 : vector<128x128xf32>
      %c0_11 = arith.constant 0 : index
      %c0_12 = arith.constant 0 : index
      %27 = vector.load %arg7[%c0_11, %c0_12] : memref<128x128xf32, #tpu.memory_space<vmem>>, vector<128x128xf32>
      %28 = vector.broadcast %17 : f32 to vector<128x128xf32>
      %29 = arith.mulf %28, %27 : vector<128x128xf32>
      %30 = arith.addf %26, %29 : vector<128x128xf32>
      %c0_13 = arith.constant 0 : index
      %c0_14 = arith.constant 0 : index
      %31 = vector.load %arg7[%c0_13, %c0_14] : memref<128x128xf32, #tpu.memory_space<vmem>>, vector<128x128xf32>
      tpu.vector_store %arg7[%c0_13, %c0_14], %18 {strides = array<i32>} : memref<128x128xf32, #tpu.memory_space<vmem>>, vector<128x128xf32>,
      %c0_15 = arith.constant 0 : index
      %c0_16 = arith.constant 0 : index
      %32 = vector.load %arg6[%c0_15, %c0_16] : memref<128x128xf32, #tpu.memory_space<vmem>>, vector<128x128xf32>
      tpu.vector_store %arg6[%c0_15, %c0_16], %30 {strides = array<i32>} : memref<128x128xf32, #tpu.memory_space<vmem>>, vector<128x128xf32>,
      %c0_17 = arith.constant 0 : index
      %c0_18 = arith.constant 0 : index
      %33 = vector.load %arg8[%c0_17, %c0_18] : memref<128x128xf32, #tpu.memory_space<vmem>>, vector<128x128xf32>
      tpu.vector_store %arg8[%c0_17, %c0_18], %30 {strides = array<i32>} : memref<128x128xf32, #tpu.memory_space<vmem>>, vector<128x128xf32>,
      %c0_19 = arith.constant 0 : index
      %c0_20 = arith.constant 0 : index
      %c0_21 = arith.constant 0 : index
      %34 = vector.load %arg5[%c0_19, %c0_20, %c0_21] : memref<1x128x128xf32, #tpu.memory_space<vmem>>, vector<1x128x128xf32>
      %35 = vector.shape_cast %34 : vector<1x128x128xf32> to vector<128x128xf32>
      %36 = vector.shape_cast %30 : vector<128x128xf32> to vector<1x128x128xf32>
      tpu.vector_store %arg5[%c0_19, %c0_20, %c0_21], %36 {strides = array<i32>} : memref<1x128x128xf32, #tpu.memory_space<vmem>>, vector<1x128x128xf32>,
    } else {
    }
    return
  }
  func.func @transform_0(%arg0: i32, %arg1: i32) -> i32 {
    %c0_i32 = arith.constant 0 : i32
    %c0_i32_0 = arith.constant 0 : i32
    return %c0_i32 : i32
  }
  func.func @transform_1(%arg0: i32, %arg1: i32) -> (i32, i32) {
    %c0_i32 = arith.constant 0 : i32
    %c0_i32_0 = arith.constant 0 : i32
    %c0_i32_1 = arith.constant 0 : i32
    return %c0_i32, %c0_i32_0 : i32, i32
  }
  func.func @transform_2(%arg0: i32, %arg1: i32) -> (i32, i32) {
    %c0_i32 = arith.constant 0 : i32
    %c0_i32_0 = arith.constant 0 : i32
    return %c0_i32, %arg0 : i32, i32
  }
  func.func @transform_3(%arg0: i32, %arg1: i32) -> (i32, i32, i32) {
    %c0_i32 = arith.constant 0 : i32
    %c0_i32_0 = arith.constant 0 : i32
    return %arg1, %c0_i32, %arg0 : i32, i32, i32
  }
}

module attributes {stable_mosaic.version = 11 : i64} {
  func.func @_poly_jacobi_kernel(%arg0: i32, %arg1: i32, %arg2: memref<33xf32, #tpu.memory_space<smem>>, %arg3: memref<128x128xf32, #tpu.memory_space<vmem>>, %arg4: memref<128x128xf32, #tpu.memory_space<vmem>>, %arg5: memref<1x128x128xf32, #tpu.memory_space<vmem>>, %arg6: memref<128x128xf32, #tpu.memory_space<vmem>>, %arg7: memref<128x128xf32, #tpu.memory_space<vmem>>, %arg8: memref<128x128xf32, #tpu.memory_space<vmem>>) attributes {dimension_semantics = [#tpu.dimension_semantics<parallel>, #tpu.dimension_semantics<arbitrary>], iteration_bounds = array<i64: 1, 11>, scalar_prefetch = 0 : i64, scratch_operands = 3 : i64, tpu.core_type = #tpu.core_type<tc>, window_params = [{transform_indices = @transform_0, window_bounds = array<i64: 33>}, {pipeline_mode = #tpu.pipeline_mode<synchronous>, transform_indices = @transform_1, window_bounds = array<i64: 128, 128>}, {transform_indices = @transform_2, window_bounds = array<i64: 128, 128>}, {transform_indices = @transform_3, window_bounds = array<i64: 1, 128, 128>}]} {
    %c0_i32 = arith.constant 0 : i32
    %0 = arith.cmpi eq, %arg1, %c0_i32 : i32
    %1 = arith.extui %0 : i1 to i32
    %c0_i32_0 = arith.constant 0 : i32
    %2 = arith.cmpi ne, %1, %c0_i32_0 : i32
    scf.if %2 {
      %c0 = arith.constant 0 : index
      %c0_3 = arith.constant 0 : index
      %6 = vector.load %arg4[%c0, %c0_3] : memref<128x128xf32, #tpu.memory_space<vmem>>, vector<128x128xf32>
      %c0_4 = arith.constant 0 : index
      %c0_5 = arith.constant 0 : index
      %7 = vector.load %arg6[%c0_4, %c0_5] : memref<128x128xf32, #tpu.memory_space<vmem>>, vector<128x128xf32>
      tpu.vector_store %arg6[%c0_4, %c0_5], %6 {strides = array<i32>} : memref<128x128xf32, #tpu.memory_space<vmem>>, vector<128x128xf32>,
      %cst = arith.constant 0.000000e+00 : f32
      %8 = vector.broadcast %cst : f32 to vector<128x128xf32>
      %c0_6 = arith.constant 0 : index
      %c0_7 = arith.constant 0 : index
      %9 = vector.load %arg7[%c0_6, %c0_7] : memref<128x128xf32, #tpu.memory_space<vmem>>, vector<128x128xf32>
      tpu.vector_store %arg7[%c0_6, %c0_7], %8 {strides = array<i32>} : memref<128x128xf32, #tpu.memory_space<vmem>>, vector<128x128xf32>,
      %c0_8 = arith.constant 0 : index
      %c0_9 = arith.constant 0 : index
      %10 = vector.load %arg8[%c0_8, %c0_9] : memref<128x128xf32, #tpu.memory_space<vmem>>, vector<128x128xf32>
      tpu.vector_store %arg8[%c0_8, %c0_9], %6 {strides = array<i32>} : memref<128x128xf32, #tpu.memory_space<vmem>>, vector<128x128xf32>,
      %c0_10 = arith.constant 0 : index
      %c0_11 = arith.constant 0 : index
      %c0_12 = arith.constant 0 : index
      %11 = vector.load %arg5[%c0_10, %c0_11, %c0_12] : memref<1x128x128xf32, #tpu.memory_space<vmem>>, vector<1x128x128xf32>
      %12 = vector.shape_cast %11 : vector<1x128x128xf32> to vector<128x128xf32>
      %13 = vector.shape_cast %6 : vector<128x128xf32> to vector<1x128x128xf32>
      tpu.vector_store %arg5[%c0_10, %c0_11, %c0_12], %13 {strides = array<i32>} : memref<1x128x128xf32, #tpu.memory_space<vmem>>, vector<1x128x128xf32>,
    } else {
    }
    %c0_i32_1 = arith.constant 0 : i32
    %3 = arith.cmpi sgt, %arg1, %c0_i32_1 : i32
    %4 = arith.extui %3 : i1 to i32
    %c0_i32_2 = arith.constant 0 : i32
    %5 = arith.cmpi ne, %4, %c0_i32_2 : i32
    scf.if %5 {
      %c3_i32 = arith.constant 3 : i32
      %6 = arith.muli %c3_i32, %arg1 : i32
      %c0_i32_3 = arith.constant 0 : i32
      %7 = arith.addi %6, %c0_i32_3 : i32
      %8 = arith.index_cast %7 : i32 to index
      %9 = memref.load %arg2[%8] : memref<33xf32, #tpu.memory_space<smem>>
      %c3_i32_4 = arith.constant 3 : i32
      %10 = arith.muli %c3_i32_4, %arg1 : i32
      %c1_i32 = arith.constant 1 : i32
      %11 = arith.addi %10, %c1_i32 : i32
      %12 = arith.index_cast %11 : i32 to index
      %13 = memref.load %arg2[%12] : memref<33xf32, #tpu.memory_space<smem>>
      %c3_i32_5 = arith.constant 3 : i32
      %14 = arith.muli %c3_i32_5, %arg1 : i32
      %c2_i32 = arith.constant 2 : i32
      %15 = arith.addi %14, %c2_i32 : i32
      %16 = arith.index_cast %15 : i32 to index
      %17 = memref.load %arg2[%16] : memref<33xf32, #tpu.memory_space<smem>>
      %c0 = arith.constant 0 : index
      %c0_6 = arith.constant 0 : index
      %18 = vector.load %arg6[%c0, %c0_6] : memref<128x128xf32, #tpu.memory_space<vmem>>, vector<128x128xf32>
      %c0_7 = arith.constant 0 : index
      %c0_8 = arith.constant 0 : index
      %19 = vector.load %arg3[%c0_7, %c0_8] : memref<128x128xf32, #tpu.memory_space<vmem>>, vector<128x128xf32>
      %c0_9 = arith.constant 0 : index
      %c0_10 = arith.constant 0 : index
      %20 = vector.load %arg8[%c0_9, %c0_10] : memref<128x128xf32, #tpu.memory_space<vmem>>, vector<128x128xf32>
      %cst = arith.constant dense<0.000000e+00> : vector<128x128xf32>
      %21 = tpu.matmul %19, %20, %cst {dimension_numbers = #tpu.dot_dimension_numbers<[1], [0], [0], [1], [0, 0, 1, 1], [], []>} : vector<128x128xf32>, vector<128x128xf32>, vector<128x128xf32> -> vector<128x128xf32>
      %22 = vector.broadcast %9 : f32 to vector<128x128xf32>
      %23 = arith.mulf %22, %21 : vector<128x128xf32>
      %24 = vector.broadcast %13 : f32 to vector<128x128xf32>
      %25 = arith.mulf %24, %18 : vector<128x128xf32>
      %26 = arith.addf %23, %25 : vector<128x128xf32>
      %c0_11 = arith.constant 0 : index
      %c0_12 = arith.constant 0 : index
      %27 = vector.load %arg7[%c0_11, %c0_12] : memref<128x128xf32, #tpu.memory_space<vmem>>, vector<128x128xf32>
      %28 = vector.broadcast %17 : f32 to vector<128x128xf32>
      %29 = arith.mulf %28, %27 : vector<128x128xf32>
      %30 = arith.addf %26, %29 : vector<128x128xf32>
      %c0_13 = arith.constant 0 : index
      %c0_14 = arith.constant 0 : index
      %31 = vector.load %arg7[%c0_13, %c0_14] : memref<128x128xf32, #tpu.memory_space<vmem>>, vector<128x128xf32>
      tpu.vector_store %arg7[%c0_13, %c0_14], %18 {strides = array<i32>} : memref<128x128xf32, #tpu.memory_space<vmem>>, vector<128x128xf32>,
      %c0_15 = arith.constant 0 : index
      %c0_16 = arith.constant 0 : index
      %32 = vector.load %arg6[%c0_15, %c0_16] : memref<128x128xf32, #tpu.memory_space<vmem>>, vector<128x128xf32>
      tpu.vector_store %arg6[%c0_15, %c0_16], %30 {strides = array<i32>} : memref<128x128xf32, #tpu.memory_space<vmem>>, vector<128x128xf32>,
      %c0_17 = arith.constant 0 : index
      %c0_18 = arith.constant 0 : index
      %33 = vector.load %arg8[%c0_17, %c0_18] : memref<128x128xf32, #tpu.memory_space<vmem>>, vector<128x128xf32>
      tpu.vector_store %arg8[%c0_17, %c0_18], %30 {strides = array<i32>} : memref<128x128xf32, #tpu.memory_space<vmem>>, vector<128x128xf32>,
      %c0_19 = arith.constant 0 : index
      %c0_20 = arith.constant 0 : index
      %c0_21 = arith.constant 0 : index
      %34 = vector.load %arg5[%c0_19, %c0_20, %c0_21] : memref<1x128x128xf32, #tpu.memory_space<vmem>>, vector<1x128x128xf32>
      %35 = vector.shape_cast %34 : vector<1x128x128xf32> to vector<128x128xf32>
      %36 = vector.shape_cast %30 : vector<128x128xf32> to vector<1x128x128xf32>
      tpu.vector_store %arg5[%c0_19, %c0_20, %c0_21], %36 {strides = array<i32>} : memref<1x128x128xf32, #tpu.memory_space<vmem>>, vector<1x128x128xf32>,
    } else {
    }
    return
  }
  func.func @transform_0(%arg0: i32, %arg1: i32) -> i32 {
    %c0_i32 = arith.constant 0 : i32
    %c0_i32_0 = arith.constant 0 : i32
    return %c0_i32 : i32
  }
  func.func @transform_1(%arg0: i32, %arg1: i32) -> (i32, i32) {
    %c0_i32 = arith.constant 0 : i32
    %c0_i32_0 = arith.constant 0 : i32
    %c0_i32_1 = arith.constant 0 : i32
    return %c0_i32, %c0_i32_0 : i32, i32
  }
  func.func @transform_2(%arg0: i32, %arg1: i32) -> (i32, i32) {
    %c0_i32 = arith.constant 0 : i32
    %c0_i32_0 = arith.constant 0 : i32
    return %c0_i32, %arg0 : i32, i32
  }
  func.func @transform_3(%arg0: i32, %arg1: i32) -> (i32, i32, i32) {
    %c0_i32 = arith.constant 0 : i32
    %c0_i32_0 = arith.constant 0 : i32
    return %arg1, %c0_i32, %arg0 : i32, i32, i32
  }
}

</mosaic_0001>

<llo_original>
// kernel: tpu_custom_call.1
$region0: #{tpu_custom_call.1}
  #allocation0 [shape = 'u32[]', space=smem, size = 0x4, offset = 0x4, fixed_abs, tag = 'smem constant byte address 0x4 - core index']
  #allocation1 [shape = 'u32[144,128]{1,0:T(1,128)}', space=vmem, size = 0x12000, scoped, tag = 'internal scratch']
  #allocation2 [shape = 'f32[128,128]{1,0:T(8,128)}', space=vmem, size = 0x10000, scoped, tag = 'scratch operand']
  #allocation3 [shape = 'f32[128,128]{1,0:T(8,128)}', space=vmem, size = 0x10000, scoped, tag = 'scratch operand']
  #allocation4 [shape = 'f32[128,128]{1,0:T(8,128)}', space=vmem, size = 0x10000, scoped, tag = 'scratch operand']
  %s0 = inlined_call_operand.hbm [shape: f32[33], index: 0, kind: input, shape index: {}]
  %s1 = inlined_call_operand.hbm [shape: f32[128,128], index: 1, kind: input, shape index: {}]
  %s2 = inlined_call_operand.hbm [shape: f32[128,128], index: 2, kind: input, shape index: {}]
  %s3 = inlined_call_operand.hbm [shape: f32[11,128,128], index: 3, kind: output, shape index: {}]
  %s4 = sld [smem:[#allocation0]]
  $region65: #{tpu_custom_call.1} parent=0
    _
  %s6 = ssub.s32 1, %s4
  %s7 = scalar_select 0, %s6, %s4
  $region1: #{tpu_custom_call.1} parent=0
    #allocation5 [shape = 'u8[512]{0}', space=smem, size = 0x200, scoped, tag = 'input window, operand 0, single buffered']
    #allocation6 [shape = 's32[2]{0}', space=sflag, size = 0x8, scoped, tag = 'scoped memory for tpu_custom_call.1']
    #allocation7 [shape = 's32[2]{0}', space=sflag, size = 0x8, scoped, tag = 'scoped memory for tpu_custom_call.1']
    #allocation8 [shape = 's32[2]{0}', space=sflag, size = 0x8, scoped, tag = 'scoped memory for tpu_custom_call.1']
    #allocation9 [shape = 'u8[65536]{0}', space=vmem, size = 0x10000, scoped, tag = 'input window, operand 1, single buffered']
    #allocation10 [shape = 'u8[65536]{0}', space=vmem, size = 0x10000, scoped, tag = 'input window, operand 2, single buffered']
    #allocation11 [shape = 's32[1]{0}', space=sflag, size = 0x4, scoped, tag = 'scoped memory for tpu_custom_call.1']
    #allocation12 [shape = 'u8[131072]{0}', space=vmem, size = 0x20000, scoped, tag = 'output window, operand 0']
    %8 = vsyncpa [#allocation8], 0
    %9 = vsyncpa [#allocation6], 0
    %10 = vsyncpa [#allocation11], 0
    %11 = vsyncpa [#allocation7], 0
    %s12 = scalar_lea.sflag [#allocation7], 1
    %13 = vsyncpa %s12, 0
    loop: start=0, step=1, limit=13
    $region2: #{tpu_custom_call.1} parent=1 // loop_pre_header
      _
    $region3: #{tpu_custom_call.1} parent=1 // loop_header
      %s15 = sphi 0, %s19
      %p16 = scmp.ge.s32.totalorder %s15, 13
      %s22 = sphi 0, %s34
      %s23 = sphi 0, %s30
      %s24 = sphi 0, %s22
      %s25 = sphi 0, %s23
      %s26 = sphi 0, %s24
      %s27 = sphi 0, %s25
      %s35 = sphi 0, %s35
      %s37 = sphi 0, %s35
      %s38 = sphi 0, %s37
      %s52 = sphi 0, %s38
      %s56 = sphi 0, %s56
      %s58 = sphi 0, %s56
      %s59 = sphi 0, %s58
      %s73 = sphi 0, %s59
      %s79 = sphi 0, %s81
      %s82 = sphi 0, %s79
      %s83 = sphi 0, %s82
      %s99 = sphi 0, %s83
      %s107 = sphi 0, %s109
      %s110 = sphi 0, %s107
      %s111 = sphi 0, %s110
      %s127 = sphi 0, %s111
    $region4: #{tpu_custom_call.1} parent=1 // loop_header_branch
      %18 = sbr.rel (%p16) target = $region8
    $region5: #{tpu_custom_call.1} parent=1 // loop_body
      %s20 = ssub.s32 %s15, 1
      %s21 = ssub.s32 %s15, 2
      %s28 = sadd.s32 1, %s23
      %p29 = scmp.ge.s32.totalorder %s28, 11
      %s30 = scalar_select %p29, 0, %s28
      %s31 = sadd.s32 1, %s22
      %s32 = scalar_select %p29, %s31, %s22
      %p33 = scmp.ge.s32.totalorder %s32, 1
      %s34 = scalar_select %p33, 0, %s32
      %s36 = sadd.s32 %s35, 1
      %p39 = scmp.eq.s32.totalorder %s15, 10
      %p40 = scmp.ne.s32.totalorder %s35, %s37
      %p41 = scmp.eq.s32.totalorder %s15, 0
      %p42 = por %p40, %p41
      %p43 = scmp.ne.s32.totalorder %s35, %s37
      %p44 = scmp.eq.s32.totalorder %s20, 10
      %p45 = por %p43, %p44
      %p46 = scmp.ne.s32.totalorder %s37, %s38
      %p47 = scmp.eq.s32.totalorder %s20, 0
      %p48 = por %p46, %p47
      %p49 = scmp.ne.s32.totalorder %s37, %s38
      %p50 = scmp.eq.s32.totalorder %s21, 10
      %p51 = por %p49, %p50
      %p53 = scmp.ne.s32.totalorder %s38, %s52
      %p54 = scmp.eq.s32.totalorder %s21, 0
      %p55 = por %p53, %p54
      %s57 = sadd.s32 %s56, 1
      %p60 = scmp.eq.s32.totalorder %s15, 10
      %p61 = scmp.ne.s32.totalorder %s56, %s58
      %p62 = scmp.eq.s32.totalorder %s15, 0
      %p63 = por %p61, %p62
      %p64 = scmp.ne.s32.totalorder %s56, %s58
      %p65 = scmp.eq.s32.totalorder %s20, 10
      %p66 = por %p64, %p65
      %p67 = scmp.ne.s32.totalorder %s58, %s59
      %p68 = scmp.eq.s32.totalorder %s20, 0
      %p69 = por %p67, %p68
      %p70 = scmp.ne.s32.totalorder %s58, %s59
      %p71 = scmp.eq.s32.totalorder %s21, 10
      %p72 = por %p70, %p71
      %p74 = scmp.ne.s32.totalorder %s59, %s73
      %p75 = scmp.eq.s32.totalorder %s21, 0
      %p76 = por %p74, %p75
      %s77 = ssub.s32 %s22, %s34
      %p78 = scmp.eq.s32.totalorder %s77, 0
      %s80 = sadd.s32 %s79, 1
      %s81 = scalar_select %p78, %s79, %s80
      %p84 = pneg %p78
      %p85 = scmp.eq.s32.totalorder %s15, 10
      %p86 = por %p84, %p85
      %p87 = scmp.ne.s32.totalorder %s79, %s82
      %p88 = scmp.eq.s32.totalorder %s15, 0
      %p89 = por %p87, %p88
      %p90 = scmp.ne.s32.totalorder %s79, %s82
      %p91 = scmp.eq.s32.totalorder %s20, 10
      %p92 = por %p90, %p91
      %p93 = scmp.ne.s32.totalorder %s82, %s83
      %p94 = scmp.eq.s32.totalorder %s20, 0
      %p95 = por %p93, %p94
      %p96 = scmp.ne.s32.totalorder %s82, %s83
      %p97 = scmp.eq.s32.totalorder %s21, 10
      %p98 = por %p96, %p97
      %p100 = scmp.ne.s32.totalorder %s83, %s99
      %p101 = scmp.eq.s32.totalorder %s21, 0
      %p102 = por %p100, %p101
      %s103 = ssub.s32 %s23, %s30
      %s104 = ssub.s32 %s22, %s34
      %s105 = sor.u32 %s103, %s104
      %p106 = scmp.eq.s32.totalorder %s105, 0
      %s108 = sadd.s32 %s107, 1
      %s109 = scalar_select %p106, %s107, %s108
      %p112 = pneg %p106
      %p113 = scmp.eq.s32.totalorder %s15, 10
      %p114 = por %p112, %p113
      %p115 = scmp.ne.s32.totalorder %s107, %s110
      %p116 = scmp.eq.s32.totalorder %s15, 0
      %p117 = por %p115, %p116
      %p118 = scmp.ne.s32.totalorder %s107, %s110
      %p119 = scmp.eq.s32.totalorder %s20, 10
      %p120 = por %p118, %p119
      %p121 = scmp.ne.s32.totalorder %s110, %s111
      %p122 = scmp.eq.s32.totalorder %s20, 0
      %p123 = por %p121, %p122
      %p124 = scmp.ne.s32.totalorder %s110, %s111
      %p125 = scmp.eq.s32.totalorder %s21, 10
      %p126 = por %p124, %p125
      %p128 = scmp.ne.s32.totalorder %s111, %s127
      %p129 = scmp.eq.s32.totalorder %s21, 0
      %p130 = por %p128, %p129
      %p131 = scmp.le.s32.totalorder 1, %s15
      %p132 = scmp.lt.s32.totalorder %s15, 12
      %p133 = pnand %p131, %p132
      %p134 = pneg %p133
      // Predicated region
      $region9: #{tpu_custom_call.1} parent=5 // pred_check
        _
      $region10: #{tpu_custom_call.1} parent=5 // pred_check_branch
        %136 = sbr.rel (%p133) target = $region12
      $region11: #{tpu_custom_call.1} parent=5 // pred_region
        %s137 = ssub.s32 %s15, 1
        // Predicated region
        $region13: #{tpu_custom_call.1} parent=11 // pred_check
          %p138 = pneg %p48
        $region14: #{tpu_custom_call.1} parent=11 // pred_check_branch
          %140 = sbr.rel (%p138) target = $region16
        $region15: #{tpu_custom_call.1} parent=11 // pred_region
          %s142 = ssub.s32 16, 16
          %143 = vsyncadd [#allocation8], %s142
          %146 = dma.hbm_to_smem %s0, 16, [#allocation5], [#allocation8]
        $region16: #{tpu_custom_call.1} parent=11 // pred_fallthru
          _
        // Predicated region
        $region17: #{tpu_custom_call.1} parent=11 // pred_check
          %p147 = pneg %p69
        $region18: #{tpu_custom_call.1} parent=11 // pred_check_branch
          %149 = sbr.rel (%p147) target = $region20
        $region19: #{tpu_custom_call.1} parent=11 // pred_region
          %s151 = ssub.s32 2048, 2048
          %152 = vsyncadd [#allocation6], %s151
          %s153 = sshll.u32 [#allocation9], 4
          %s154 = int_to_ptr.vmem [resolvable:$true] %s153
          %159 = dma.hbm_to_vmem [thread:$0]  %s1, 2048, %s154, [#allocation6], 128, 128, 8
        $region20: #{tpu_custom_call.1} parent=11 // pred_fallthru
          _
        // Predicated region
        $region21: #{tpu_custom_call.1} parent=11 // pred_check
          %p160 = pneg %p95
        $region22: #{tpu_custom_call.1} parent=11 // pred_check_branch
          %162 = sbr.rel (%p160) target = $region24
        $region23: #{tpu_custom_call.1} parent=11 // pred_region
          %s164 = ssub.s32 2048, 2048
          %165 = vsyncadd [#allocation11], %s164
          %s166 = smul.addr %s24, 128
          %s167 = scalar_lea.hbm %s2, %s166
          %s168 = sshll.u32 [#allocation10], 4
          %s169 = int_to_ptr.vmem [resolvable:$true] %s168
          %174 = dma.hbm_to_vmem [thread:$0]  %s167, 2048, %s169, [#allocation11], 128, 128, 8
        $region24: #{tpu_custom_call.1} parent=11 // pred_fallthru
          _
      $region12: #{tpu_custom_call.1} parent=5 // pred_fallthru
        _
      %p175 = scmp.lt.s32.totalorder %s15, 11
      // Predicated region
      $region25: #{tpu_custom_call.1} parent=5 // pred_check
        %p176 = pneg %p175
      $region26: #{tpu_custom_call.1} parent=5 // pred_check_branch
        %178 = sbr.rel (%p176) target = $region28
      $region27: #{tpu_custom_call.1} parent=5 // pred_region
        _
      $region28: #{tpu_custom_call.1} parent=5 // pred_fallthru
        _
      %p179 = scmp.le.s32.totalorder 1, %s15
      %p180 = scmp.lt.s32.totalorder %s15, 12
      %p181 = pnand %p179, %p180
      %p182 = pneg %p181
      // Predicated region
      $region29: #{tpu_custom_call.1} parent=5 // pred_check
        _
      $region30: #{tpu_custom_call.1} parent=5 // pred_check_branch
        %184 = sbr.rel (%p181) target = $region32
      $region31: #{tpu_custom_call.1} parent=5 // pred_region
        %s185 = ssub.s32 %s15, 1
        // Predicated region
        $region33: #{tpu_custom_call.1} parent=31 // pred_check
          %p186 = pneg %p48
        $region34: #{tpu_custom_call.1} parent=31 // pred_check_branch
          %188 = sbr.rel (%p186) target = $region36
        $region35: #{tpu_custom_call.1} parent=31 // pred_region
          %189 = dma.done [#allocation8], 16
        $region36: #{tpu_custom_call.1} parent=31 // pred_fallthru
          _
        // Predicated region
        $region37: #{tpu_custom_call.1} parent=31 // pred_check
          %p190 = pneg %p69
        $region38: #{tpu_custom_call.1} parent=31 // pred_check_branch
          %192 = sbr.rel (%p190) target = $region40
        $region39: #{tpu_custom_call.1} parent=31 // pred_region
          %193 = dma.done [#allocation6], 2048
        $region40: #{tpu_custom_call.1} parent=31 // pred_fallthru
          _
        // Predicated region
        $region41: #{tpu_custom_call.1} parent=31 // pred_check
          %p194 = pneg %p95
        $region42: #{tpu_custom_call.1} parent=31 // pred_check_branch
          %196 = sbr.rel (%p194) target = $region44
        $region43: #{tpu_custom_call.1} parent=31 // pred_region
          %197 = dma.done [#allocation11], 2048
        $region44: #{tpu_custom_call.1} parent=31 // pred_fallthru
          _
        %198 = sfence
        %p199 = pneg %p48
        %p200 = pneg %p45
        %p201 = pneg %p69
        %p202 = pneg %p66
        %p203 = pneg %p95
        %p204 = pneg %p92
        %p205 = pneg %p123
        %p206 = pneg %p120
        %s207 = sand.u32 %s110, 1
        %s208 = scalar_lea.sflag [#allocation7], %s207
        %s209 = sand.u32 %s110, 1
        %s210 = smul.addr %s209, 128
        %s211 = scalar_lea.vmem [#allocation12], %s210
        %p212 = scmp.eq.s32.totalorder %s25, 0
        // Predicated region
        $region45: #{tpu_custom_call.1} parent=31 // pred_check
          %p213 = pneg %p212
        $region46: #{tpu_custom_call.1} parent=31 // pred_check_branch
          %215 = sbr.rel (%p213) target = $region48
        $region47: #{tpu_custom_call.1} parent=31 // pred_region
          %v216 = vld [vmem:[#allocation10] sm:$0xff]
          %v217 = vld [vmem:[#allocation10 + $0x8] sm:$0xff]
          %v218 = vld [vmem:[#allocation10 + $0x10] sm:$0xff]
          %v219 = vld [vmem:[#allocation10 + $0x18] sm:$0xff]
          %v220 = vld [vmem:[#allocation10 + $0x20] sm:$0xff]
          %v221 = vld [vmem:[#allocation10 + $0x28] sm:$0xff]
          %v222 = vld [vmem:[#allocation10 + $0x30] sm:$0xff]
          %v223 = vld [vmem:[#allocation10 + $0x38] sm:$0xff]
          %v224 = vld [vmem:[#allocation10 + $0x40] sm:$0xff]
          %v225 = vld [vmem:[#allocation10 + $0x48] sm:$0xff]
          %v226 = vld [vmem:[#allocation10 + $0x50] sm:$0xff]
          %v227 = vld [vmem:[#allocation10 + $0x58] sm:$0xff]
          %v228 = vld [vmem:[#allocation10 + $0x60] sm:$0xff]
          %v229 = vld [vmem:[#allocation10 + $0x68] sm:$0xff]
          %v230 = vld [vmem:[#allocation10 + $0x70] sm:$0xff]
          %v231 = vld [vmem:[#allocation10 + $0x78] sm:$0xff]
          %232 = vst [vmem:[#allocation2] sm:$0xff] %v216
          %233 = vst [vmem:[#allocation2 + $0x8] sm:$0xff] %v217
          %234 = vst [vmem:[#allocation2 + $0x10] sm:$0xff] %v218
          %235 = vst [vmem:[#allocation2 + $0x18] sm:$0xff] %v219
          %236 = vst [vmem:[#allocation2 + $0x20] sm:$0xff] %v220
          %237 = vst [vmem:[#allocation2 + $0x28] sm:$0xff] %v221
          %238 = vst [vmem:[#allocation2 + $0x30] sm:$0xff] %v222
          %239 = vst [vmem:[#allocation2 + $0x38] sm:$0xff] %v223
          %240 = vst [vmem:[#allocation2 + $0x40] sm:$0xff] %v224
          %241 = vst [vmem:[#allocation2 + $0x48] sm:$0xff] %v225
          %242 = vst [vmem:[#allocation2 + $0x50] sm:$0xff] %v226
          %243 = vst [vmem:[#allocation2 + $0x58] sm:$0xff] %v227
          %244 = vst [vmem:[#allocation2 + $0x60] sm:$0xff] %v228
          %245 = vst [vmem:[#allocation2 + $0x68] sm:$0xff] %v229
          %246 = vst [vmem:[#allocation2 + $0x70] sm:$0xff] %v230
          %247 = vst [vmem:[#allocation2 + $0x78] sm:$0xff] %v231
          %248 = vst [vmem:[#allocation3] sm:$0xff] 0.0
          %249 = vst [vmem:[#allocation3 + $0x8] sm:$0xff] 0.0
          %250 = vst [vmem:[#allocation3 + $0x10] sm:$0xff] 0.0
          %251 = vst [vmem:[#allocation3 + $0x18] sm:$0xff] 0.0
          %252 = vst [vmem:[#allocation3 + $0x20] sm:$0xff] 0.0
          %253 = vst [vmem:[#allocation3 + $0x28] sm:$0xff] 0.0
          %254 = vst [vmem:[#allocation3 + $0x30] sm:$0xff] 0.0
          %255 = vst [vmem:[#allocation3 + $0x38] sm:$0xff] 0.0
          %256 = vst [vmem:[#allocation3 + $0x40] sm:$0xff] 0.0
          %257 = vst [vmem:[#allocation3 + $0x48] sm:$0xff] 0.0
          %258 = vst [vmem:[#allocation3 + $0x50] sm:$0xff] 0.0
          %259 = vst [vmem:[#allocation3 + $0x58] sm:$0xff] 0.0
          %260 = vst [vmem:[#allocation3 + $0x60] sm:$0xff] 0.0
          %261 = vst [vmem:[#allocation3 + $0x68] sm:$0xff] 0.0
          %262 = vst [vmem:[#allocation3 + $0x70] sm:$0xff] 0.0
          %263 = vst [vmem:[#allocation3 + $0x78] sm:$0xff] 0.0
          %264 = vst [vmem:[#allocation4] sm:$0xff] %v216
          %265 = vst [vmem:[#allocation4 + $0x8] sm:$0xff] %v217
          %266 = vst [vmem:[#allocation4 + $0x10] sm:$0xff] %v218
          %267 = vst [vmem:[#allocation4 + $0x18] sm:$0xff] %v219
          %268 = vst [vmem:[#allocation4 + $0x20] sm:$0xff] %v220
          %269 = vst [vmem:[#allocation4 + $0x28] sm:$0xff] %v221
          %270 = vst [vmem:[#allocation4 + $0x30] sm:$0xff] %v222
          %271 = vst [vmem:[#allocation4 + $0x38] sm:$0xff] %v223
          %272 = vst [vmem:[#allocation4 + $0x40] sm:$0xff] %v224
          %273 = vst [vmem:[#allocation4 + $0x48] sm:$0xff] %v225
          %274 = vst [vmem:[#allocation4 + $0x50] sm:$0xff] %v226
          %275 = vst [vmem:[#allocation4 + $0x58] sm:$0xff] %v227
          %276 = vst [vmem:[#allocation4 + $0x60] sm:$0xff] %v228
          %277 = vst [vmem:[#allocation4 + $0x68] sm:$0xff] %v229
          %278 = vst [vmem:[#allocation4 + $0x70] sm:$0xff] %v230
          %279 = vst [vmem:[#allocation4 + $0x78] sm:$0xff] %v231
          %280 = vst [vmem:[%s211] sm:$0xff] %v216
          %281 = vst [vmem:[%s211 + $0x8] sm:$0xff] %v217
          %282 = vst [vmem:[%s211 + $0x10] sm:$0xff] %v218
          %283 = vst [vmem:[%s211 + $0x18] sm:$0xff] %v219
          %284 = vst [vmem:[%s211 + $0x20] sm:$0xff] %v220
          %285 = vst [vmem:[%s211 + $0x28] sm:$0xff] %v221
          %286 = vst [vmem:[%s211 + $0x30] sm:$0xff] %v222
          %287 = vst [vmem:[%s211 + $0x38] sm:$0xff] %v223
          %288 = vst [vmem:[%s211 + $0x40] sm:$0xff] %v224
          %289 = vst [vmem:[%s211 + $0x48] sm:$0xff] %v225
          %290 = vst [vmem:[%s211 + $0x50] sm:$0xff] %v226
          %291 = vst [vmem:[%s211 + $0x58] sm:$0xff] %v227
          %292 = vst [vmem:[%s211 + $0x60] sm:$0xff] %v228
          %293 = vst [vmem:[%s211 + $0x68] sm:$0xff] %v229
          %294 = vst [vmem:[%s211 + $0x70] sm:$0xff] %v230
          %295 = vst [vmem:[%s211 + $0x78] sm:$0xff] %v231
        $region48: #{tpu_custom_call.1} parent=31 // pred_fallthru
          _
        %p296 = scmp.gt.s32.totalorder %s25, 0
        // Predicated region
        $region49: #{tpu_custom_call.1} parent=31 // pred_check
          %p297 = pneg %p296
        $region50: #{tpu_custom_call.1} parent=31 // pred_check_branch
          %299 = sbr.rel (%p297) target = $region52
        $region51: #{tpu_custom_call.1} parent=31 // pred_region
          %s300 = smul.u32 %s25, 3
          %s301 = sld [smem:[#allocation5 + %s300]]
          %s302 = sadd.s32 %s300, 1
          %s303 = sld [smem:[#allocation5 + %s302]]
          %s304 = sadd.s32 %s300, 2
          %s305 = sld [smem:[#allocation5 + %s304]]
          %v306 = vld [vmem:[#allocation2] sm:$0xff]
          %v307 = vld [vmem:[#allocation2 + $0x8] sm:$0xff]
          %v308 = vld [vmem:[#allocation2 + $0x10] sm:$0xff]
          %v309 = vld [vmem:[#allocation2 + $0x18] sm:$0xff]
          %v310 = vld [vmem:[#allocation2 + $0x20] sm:$0xff]
          %v311 = vld [vmem:[#allocation2 + $0x28] sm:$0xff]
          %v312 = vld [vmem:[#allocation2 + $0x30] sm:$0xff]
          %v313 = vld [vmem:[#allocation2 + $0x38] sm:$0xff]
          %v314 = vld [vmem:[#allocation2 + $0x40] sm:$0xff]
          %v315 = vld [vmem:[#allocation2 + $0x48] sm:$0xff]
          %v316 = vld [vmem:[#allocation2 + $0x50] sm:$0xff]
          %v317 = vld [vmem:[#allocation2 + $0x58] sm:$0xff]
          %v318 = vld [vmem:[#allocation2 + $0x60] sm:$0xff]
          %v319 = vld [vmem:[#allocation2 + $0x68] sm:$0xff]
          %v320 = vld [vmem:[#allocation2 + $0x70] sm:$0xff]
          %v321 = vld [vmem:[#allocation2 + $0x78] sm:$0xff]
          %v322 = vld [vmem:[#allocation9] sm:$0xff]
          %v323 = vld [vmem:[#allocation9 + $0x8] sm:$0xff]
          %v324 = vld [vmem:[#allocation9 + $0x10] sm:$0xff]
          %v325 = vld [vmem:[#allocation9 + $0x18] sm:$0xff]
          %v326 = vld [vmem:[#allocation9 + $0x20] sm:$0xff]
          %v327 = vld [vmem:[#allocation9 + $0x28] sm:$0xff]
          %v328 = vld [vmem:[#allocation9 + $0x30] sm:$0xff]
          %v329 = vld [vmem:[#allocation9 + $0x38] sm:$0xff]
          %v330 = vld [vmem:[#allocation9 + $0x40] sm:$0xff]
          %v331 = vld [vmem:[#allocation9 + $0x48] sm:$0xff]
          %v332 = vld [vmem:[#allocation9 + $0x50] sm:$0xff]
          %v333 = vld [vmem:[#allocation9 + $0x58] sm:$0xff]
          %v334 = vld [vmem:[#allocation9 + $0x60] sm:$0xff]
          %v335 = vld [vmem:[#allocation9 + $0x68] sm:$0xff]
          %v336 = vld [vmem:[#allocation9 + $0x70] sm:$0xff]
          %v337 = vld [vmem:[#allocation9 + $0x78] sm:$0xff]
          %v338 = vld [vmem:[#allocation4] sm:$0xff]
          %v339 = vld [vmem:[#allocation4 + $0x8] sm:$0xff]
          %v340 = vld [vmem:[#allocation4 + $0x10] sm:$0xff]
          %v341 = vld [vmem:[#allocation4 + $0x18] sm:$0xff]
          %v342 = vld [vmem:[#allocation4 + $0x20] sm:$0xff]
          %v343 = vld [vmem:[#allocation4 + $0x28] sm:$0xff]
          %v344 = vld [vmem:[#allocation4 + $0x30] sm:$0xff]
          %v345 = vld [vmem:[#allocation4 + $0x38] sm:$0xff]
          %v346 = vld [vmem:[#allocation4 + $0x40] sm:$0xff]
          %v347 = vld [vmem:[#allocation4 + $0x48] sm:$0xff]
          %v348 = vld [vmem:[#allocation4 + $0x50] sm:$0xff]
          %v349 = vld [vmem:[#allocation4 + $0x58] sm:$0xff]
          %v350 = vld [vmem:[#allocation4 + $0x60] sm:$0xff]
          %v351 = vld [vmem:[#allocation4 + $0x68] sm:$0xff]
          %v352 = vld [vmem:[#allocation4 + $0x70] sm:$0xff]
          %v353 = vld [vmem:[#allocation4 + $0x78] sm:$0xff]
          %354 = vmatprep.subr.mxu0 0.0
          %355 = vmatpush1.msra.mxu0 %v353
          %356 = vmatprep.subr.mxu0 0.0
          %357 = vmatpush1.msra.mxu0 %v352
          %358 = vmatprep.subr.mxu0 0.0
          %359 = vmatpush1.msra.mxu0 %v351
          %360 = vmatprep.subr.mxu0 0.0
          %361 = vmatpush1.msra.mxu0 %v350
          %362 = vmatprep.subr.mxu0 0.0
          %363 = vmatpush1.msra.mxu0 %v349
          %364 = vmatprep.subr.mxu0 0.0
          %365 = vmatpush1.msra.mxu0 %v348
          %366 = vmatprep.subr.mxu0 0.0
          %367 = vmatpush1.msra.mxu0 %v347
          %368 = vmatprep.subr.mxu0 0.0
          %369 = vmatpush1.msra.mxu0 %v346
          %370 = vmatprep.subr.mxu0 0.0
          %371 = vmatpush1.msra.mxu0 %v345
          %372 = vmatprep.subr.mxu0 0.0
          %373 = vmatpush1.msra.mxu0 %v344
          %374 = vmatprep.subr.mxu0 0.0
          %375 = vmatpush1.msra.mxu0 %v343
          %376 = vmatprep.subr.mxu0 0.0
          %377 = vmatpush1.msra.mxu0 %v342
          %378 = vmatprep.subr.mxu0 0.0
          %379 = vmatpush1.msra.mxu0 %v341
          %380 = vmatprep.subr.mxu0 0.0
          %381 = vmatpush1.msra.mxu0 %v340
          %382 = vmatprep.subr.mxu0 0.0
          %383 = vmatpush1.msra.mxu0 %v339
          %384 = vmatprep.subr.mxu0 0.0
          %385 = vmatpush1.msra.mxu0 %v338
          %386 = vmatprep.subr.mxu0 0.0
          %387 = vmatpush2.msra.mxu0 0.0
          %388 = vmatprep.subr.mxu0 0.0
          %389 = vmatpush2.msra.mxu0 0.0
          %390 = vmatprep.subr.mxu0 0.0
          %391 = vmatpush2.msra.mxu0 0.0
          %392 = vmatprep.subr.mxu0 0.0
          %393 = vmatpush2.msra.mxu0 0.0
          %394 = vmatprep.subr.mxu0 0.0
          %395 = vmatpush2.msra.mxu0 0.0
          %396 = vmatprep.subr.mxu0 0.0
          %397 = vmatpush2.msra.mxu0 0.0
          %398 = vmatprep.subr.mxu0 0.0
          %399 = vmatpush2.msra.mxu0 0.0
          %400 = vmatprep.subr.mxu0 0.0
          %401 = vmatpush2.msra.mxu0 0.0
          %402 = vmatprep.subr.mxu0 0.0
          %403 = vmatpush2.msra.mxu0 0.0
          %404 = vmatprep.subr.mxu0 0.0
          %405 = vmatpush2.msra.mxu0 0.0
          %406 = vmatprep.subr.mxu0 0.0
          %407 = vmatpush2.msra.mxu0 0.0
          %408 = vmatprep.subr.mxu0 0.0
          %409 = vmatpush2.msra.mxu0 0.0
          %410 = vmatprep.subr.mxu0 0.0
          %411 = vmatpush2.msra.mxu0 0.0
          %412 = vmatprep.subr.mxu0 0.0
          %413 = vmatpush2.msra.mxu0 0.0
          %414 = vmatprep.subr.mxu0 0.0
          %415 = vmatpush2.msra.mxu0 0.0
          %416 = vmatprep.subr.mxu0 0.0
          %417 = vmatpush2.msra.mxu0 0.0
          %418 = vmatprep.mubr.f32.mxu0 0.0
          %419 = vmatmul.mubr.f32.gmra.mxu0 %v322
          %v420 = vpop.f32.mrf.mxu0
          %v421 = vadd.f32 0.0, %v420
          %v422 = vpop.f32.mrf.mxu0
          %423 = vmatprep.mubr.f32.mxu0 0.0
          %424 = vmatmul.mubr.f32.gmra.mxu0 %v323
          %v425 = vpop.f32.mrf.mxu0
          %v426 = vadd.f32 0.0, %v425
          %v427 = vpop.f32.mrf.mxu0
          %428 = vmatprep.mubr.f32.mxu0 0.0
          %429 = vmatmul.mubr.f32.gmra.mxu0 %v324
          %v430 = vpop.f32.mrf.mxu0
          %v431 = vadd.f32 0.0, %v430
          %v432 = vpop.f32.mrf.mxu0
          %433 = vmatprep.mubr.f32.mxu0 0.0
          %434 = vmatmul.mubr.f32.gmra.mxu0 %v325
          %v435 = vpop.f32.mrf.mxu0
          %v436 = vadd.f32 0.0, %v435
          %v437 = vpop.f32.mrf.mxu0
          %438 = vmatprep.mubr.f32.mxu0 0.0
          %439 = vmatmul.mubr.f32.gmra.mxu0 %v326
          %v440 = vpop.f32.mrf.mxu0
          %v441 = vadd.f32 0.0, %v440
          %v442 = vpop.f32.mrf.mxu0
          %443 = vmatprep.mubr.f32.mxu0 0.0
          %444 = vmatmul.mubr.f32.gmra.mxu0 %v327
          %v445 = vpop.f32.mrf.mxu0
          %v446 = vadd.f32 0.0, %v445
          %v447 = vpop.f32.mrf.mxu0
          %448 = vmatprep.mubr.f32.mxu0 0.0
          %449 = vmatmul.mubr.f32.gmra.mxu0 %v328
          %v450 = vpop.f32.mrf.mxu0
          %v451 = vadd.f32 0.0, %v450
          %v452 = vpop.f32.mrf.mxu0
          %453 = vmatprep.mubr.f32.mxu0 0.0
          %454 = vmatmul.mubr.f32.gmra.mxu0 %v329
          %v455 = vpop.f32.mrf.mxu0
          %v456 = vadd.f32 0.0, %v455
          %v457 = vpop.f32.mrf.mxu0
          %458 = vmatprep.mubr.f32.mxu0 0.0
          %459 = vmatmul.mubr.f32.gmra.mxu0 %v330
          %v460 = vpop.f32.mrf.mxu0
          %v461 = vadd.f32 0.0, %v460
          %v462 = vpop.f32.mrf.mxu0
          %463 = vmatprep.mubr.f32.mxu0 0.0
          %464 = vmatmul.mubr.f32.gmra.mxu0 %v331
          %v465 = vpop.f32.mrf.mxu0
          %v466 = vadd.f32 0.0, %v465
          %v467 = vpop.f32.mrf.mxu0
          %468 = vmatprep.mubr.f32.mxu0 0.0
          %469 = vmatmul.mubr.f32.gmra.mxu0 %v332
          %v470 = vpop.f32.mrf.mxu0
          %v471 = vadd.f32 0.0, %v470
          %v472 = vpop.f32.mrf.mxu0
          %473 = vmatprep.mubr.f32.mxu0 0.0
          %474 = vmatmul.mubr.f32.gmra.mxu0 %v333
          %v475 = vpop.f32.mrf.mxu0
          %v476 = vadd.f32 0.0, %v475
          %v477 = vpop.f32.mrf.mxu0
          %478 = vmatprep.mubr.f32.mxu0 0.0
          %479 = vmatmul.mubr.f32.gmra.mxu0 %v334
          %v480 = vpop.f32.mrf.mxu0
          %v481 = vadd.f32 0.0, %v480
          %v482 = vpop.f32.mrf.mxu0
          %483 = vmatprep.mubr.f32.mxu0 0.0
          %484 = vmatmul.mubr.f32.gmra.mxu0 %v335
          %v485 = vpop.f32.mrf.mxu0
          %v486 = vadd.f32 0.0, %v485
          %v487 = vpop.f32.mrf.mxu0
          %488 = vmatprep.mubr.f32.mxu0 0.0
          %489 = vmatmul.mubr.f32.gmra.mxu0 %v336
          %v490 = vpop.f32.mrf.mxu0
          %v491 = vadd.f32 0.0, %v490
          %v492 = vpop.f32.mrf.mxu0
          %493 = vmatprep.mubr.f32.mxu0 0.0
          %494 = vmatmul.mubr.f32.gmra.mxu0 %v337
          %v495 = vpop.f32.mrf.mxu0
          %v496 = vadd.f32 0.0, %v495
          %v497 = vpop.f32.mrf.mxu0
          %498 = vdwg.mxu0
          %v499 = vstv %s301
          %v500 = vmul.f32 %v499, %v421
          %v501 = vmul.f32 %v499, %v426
          %v502 = vmul.f32 %v499, %v431
          %v503 = vmul.f32 %v499, %v436
          %v504 = vmul.f32 %v499, %v441
          %v505 = vmul.f32 %v499, %v446
          %v506 = vmul.f32 %v499, %v451
          %v507 = vmul.f32 %v499, %v456
          %v508 = vmul.f32 %v499, %v461
          %v509 = vmul.f32 %v499, %v466
          %v510 = vmul.f32 %v499, %v471
          %v511 = vmul.f32 %v499, %v476
          %v512 = vmul.f32 %v499, %v481
          %v513 = vmul.f32 %v499, %v486
          %v514 = vmul.f32 %v499, %v491
          %v515 = vmul.f32 %v499, %v496
          %v516 = vstv %s303
          %v517 = vmul.f32 %v516, %v306
          %v518 = vmul.f32 %v516, %v307
          %v519 = vmul.f32 %v516, %v308
          %v520 = vmul.f32 %v516, %v309
          %v521 = vmul.f32 %v516, %v310
          %v522 = vmul.f32 %v516, %v311
          %v523 = vmul.f32 %v516, %v312
          %v524 = vmul.f32 %v516, %v313
          %v525 = vmul.f32 %v516, %v314
          %v526 = vmul.f32 %v516, %v315
          %v527 = vmul.f32 %v516, %v316
          %v528 = vmul.f32 %v516, %v317
          %v529 = vmul.f32 %v516, %v318
          %v530 = vmul.f32 %v516, %v319
          %v531 = vmul.f32 %v516, %v320
          %v532 = vmul.f32 %v516, %v321
          %v533 = vadd.f32 %v500, %v517
          %v534 = vadd.f32 %v501, %v518
          %v535 = vadd.f32 %v502, %v519
          %v536 = vadd.f32 %v503, %v520
          %v537 = vadd.f32 %v504, %v521
          %v538 = vadd.f32 %v505, %v522
          %v539 = vadd.f32 %v506, %v523
          %v540 = vadd.f32 %v507, %v524
          %v541 = vadd.f32 %v508, %v525
          %v542 = vadd.f32 %v509, %v526
          %v543 = vadd.f32 %v510, %v527
          %v544 = vadd.f32 %v511, %v528
          %v545 = vadd.f32 %v512, %v529
          %v546 = vadd.f32 %v513, %v530
          %v547 = vadd.f32 %v514, %v531
          %v548 = vadd.f32 %v515, %v532
          %v549 = vld [vmem:[#allocation3] sm:$0xff]
          %v550 = vld [vmem:[#allocation3 + $0x8] sm:$0xff]
          %v551 = vld [vmem:[#allocation3 + $0x10] sm:$0xff]
          %v552 = vld [vmem:[#allocation3 + $0x18] sm:$0xff]
          %v553 = vld [vmem:[#allocation3 + $0x20] sm:$0xff]
          %v554 = vld [vmem:[#allocation3 + $0x28] sm:$0xff]
          %v555 = vld [vmem:[#allocation3 + $0x30] sm:$0xff]
          %v556 = vld [vmem:[#allocation3 + $0x38] sm:$0xff]
          %v557 = vld [vmem:[#allocation3 + $0x40] sm:$0xff]
          %v558 = vld [vmem:[#allocation3 + $0x48] sm:$0xff]
          %v559 = vld [vmem:[#allocation3 + $0x50] sm:$0xff]
          %v560 = vld [vmem:[#allocation3 + $0x58] sm:$0xff]
          %v561 = vld [vmem:[#allocation3 + $0x60] sm:$0xff]
          %v562 = vld [vmem:[#allocation3 + $0x68] sm:$0xff]
          %v563 = vld [vmem:[#allocation3 + $0x70] sm:$0xff]
          %v564 = vld [vmem:[#allocation3 + $0x78] sm:$0xff]
          %v565 = vstv %s305
          %v566 = vmul.f32 %v565, %v549
          %v567 = vmul.f32 %v565, %v550
          %v568 = vmul.f32 %v565, %v551
          %v569 = vmul.f32 %v565, %v552
          %v570 = vmul.f32 %v565, %v553
          %v571 = vmul.f32 %v565, %v554
          %v572 = vmul.f32 %v565, %v555
          %v573 = vmul.f32 %v565, %v556
          %v574 = vmul.f32 %v565, %v557
          %v575 = vmul.f32 %v565, %v558
          %v576 = vmul.f32 %v565, %v559
          %v577 = vmul.f32 %v565, %v560
          %v578 = vmul.f32 %v565, %v561
          %v579 = vmul.f32 %v565, %v562
          %v580 = vmul.f32 %v565, %v563
          %v581 = vmul.f32 %v565, %v564
          %v582 = vadd.f32 %v533, %v566
          %v583 = vadd.f32 %v534, %v567
          %v584 = vadd.f32 %v535, %v568
          %v585 = vadd.f32 %v536, %v569
          %v586 = vadd.f32 %v537, %v570
          %v587 = vadd.f32 %v538, %v571
          %v588 = vadd.f32 %v539, %v572
          %v589 = vadd.f32 %v540, %v573
          %v590 = vadd.f32 %v541, %v574
          %v591 = vadd.f32 %v542, %v575
          %v592 = vadd.f32 %v543, %v576
          %v593 = vadd.f32 %v544, %v577
          %v594 = vadd.f32 %v545, %v578
          %v595 = vadd.f32 %v546, %v579
          %v596 = vadd.f32 %v547, %v580
          %v597 = vadd.f32 %v548, %v581
          %598 = vst [vmem:[#allocation3] sm:$0xff] %v306
          %599 = vst [vmem:[#allocation3 + $0x8] sm:$0xff] %v307
          %600 = vst [vmem:[#allocation3 + $0x10] sm:$0xff] %v308
          %601 = vst [vmem:[#allocation3 + $0x18] sm:$0xff] %v309
          %602 = vst [vmem:[#allocation3 + $0x20] sm:$0xff] %v310
          %603 = vst [vmem:[#allocation3 + $0x28] sm:$0xff] %v311
          %604 = vst [vmem:[#allocation3 + $0x30] sm:$0xff] %v312
          %605 = vst [vmem:[#allocation3 + $0x38] sm:$0xff] %v313
          %606 = vst [vmem:[#allocation3 + $0x40] sm:$0xff] %v314
          %607 = vst [vmem:[#allocation3 + $0x48] sm:$0xff] %v315
          %608 = vst [vmem:[#allocation3 + $0x50] sm:$0xff] %v316
          %609 = vst [vmem:[#allocation3 + $0x58] sm:$0xff] %v317
          %610 = vst [vmem:[#allocation3 + $0x60] sm:$0xff] %v318
          %611 = vst [vmem:[#allocation3 + $0x68] sm:$0xff] %v319
          %612 = vst [vmem:[#allocation3 + $0x70] sm:$0xff] %v320
          %613 = vst [vmem:[#allocation3 + $0x78] sm:$0xff] %v321
          %614 = vst [vmem:[#allocation2] sm:$0xff] %v582
          %615 = vst [vmem:[#allocation2 + $0x8] sm:$0xff] %v583
          %616 = vst [vmem:[#allocation2 + $0x10] sm:$0xff] %v584
          %617 = vst [vmem:[#allocation2 + $0x18] sm:$0xff] %v585
          %618 = vst [vmem:[#allocation2 + $0x20] sm:$0xff] %v586
          %619 = vst [vmem:[#allocation2 + $0x28] sm:$0xff] %v587
          %620 = vst [vmem:[#allocation2 + $0x30] sm:$0xff] %v588
          %621 = vst [vmem:[#allocation2 + $0x38] sm:$0xff] %v589
          %622 = vst [vmem:[#allocation2 + $0x40] sm:$0xff] %v590
          %623 = vst [vmem:[#allocation2 + $0x48] sm:$0xff] %v591
          %624 = vst [vmem:[#allocation2 + $0x50] sm:$0xff] %v592
          %625 = vst [vmem:[#allocation2 + $0x58] sm:$0xff] %v593
          %626 = vst [vmem:[#allocation2 + $0x60] sm:$0xff] %v594
          %627 = vst [vmem:[#allocation2 + $0x68] sm:$0xff] %v595
          %628 = vst [vmem:[#allocation2 + $0x70] sm:$0xff] %v596
          %629 = vst [vmem:[#allocation2 + $0x78] sm:$0xff] %v597
          %630 = vst [vmem:[#allocation4] sm:$0xff] %v582
          %631 = vst [vmem:[#allocation4 + $0x8] sm:$0xff] %v583
          %632 = vst [vmem:[#allocation4 + $0x10] sm:$0xff] %v584
          %633 = vst [vmem:[#allocation4 + $0x18] sm:$0xff] %v585
          %634 = vst [vmem:[#allocation4 + $0x20] sm:$0xff] %v586
          %635 = vst [vmem:[#allocation4 + $0x28] sm:$0xff] %v587
          %636 = vst [vmem:[#allocation4 + $0x30] sm:$0xff] %v588
          %637 = vst [vmem:[#allocation4 + $0x38] sm:$0xff] %v589
          %638 = vst [vmem:[#allocation4 + $0x40] sm:$0xff] %v590
          %639 = vst [vmem:[#allocation4 + $0x48] sm:$0xff] %v591
          %640 = vst [vmem:[#allocation4 + $0x50] sm:$0xff] %v592
          %641 = vst [vmem:[#allocation4 + $0x58] sm:$0xff] %v593
          %642 = vst [vmem:[#allocation4 + $0x60] sm:$0xff] %v594
          %643 = vst [vmem:[#allocation4 + $0x68] sm:$0xff] %v595
          %644 = vst [vmem:[#allocation4 + $0x70] sm:$0xff] %v596
          %645 = vst [vmem:[#allocation4 + $0x78] sm:$0xff] %v597
          %646 = vst [vmem:[%s211] sm:$0xff] %v582
          %647 = vst [vmem:[%s211 + $0x8] sm:$0xff] %v583
          %648 = vst [vmem:[%s211 + $0x10] sm:$0xff] %v584
          %649 = vst [vmem:[%s211 + $0x18] sm:$0xff] %v585
          %650 = vst [vmem:[%s211 + $0x20] sm:$0xff] %v586
          %651 = vst [vmem:[%s211 + $0x28] sm:$0xff] %v587
          %652 = vst [vmem:[%s211 + $0x30] sm:$0xff] %v588
          %653 = vst [vmem:[%s211 + $0x38] sm:$0xff] %v589
          %654 = vst [vmem:[%s211 + $0x40] sm:$0xff] %v590
          %655 = vst [vmem:[%s211 + $0x48] sm:$0xff] %v591
          %656 = vst [vmem:[%s211 + $0x50] sm:$0xff] %v592
          %657 = vst [vmem:[%s211 + $0x58] sm:$0xff] %v593
          %658 = vst [vmem:[%s211 + $0x60] sm:$0xff] %v594
          %659 = vst [vmem:[%s211 + $0x68] sm:$0xff] %v595
          %660 = vst [vmem:[%s211 + $0x70] sm:$0xff] %v596
          %661 = vst [vmem:[%s211 + $0x78] sm:$0xff] %v597
        $region52: #{tpu_custom_call.1} parent=31 // pred_fallthru
          _
        %s662 = sand.u32 %s110, 1
        %s663 = scalar_lea.sflag [#allocation7], %s662
        %s664 = sand.u32 %s110, 1
        %s665 = smul.addr %s664, 128
        %s666 = scalar_lea.vmem [#allocation12], %s665
        // Predicated region
        $region53: #{tpu_custom_call.1} parent=31 // pred_check
          %p667 = pneg %p120
        $region54: #{tpu_custom_call.1} parent=31 // pred_check_branch
          %669 = sbr.rel (%p667) target = $region56
        $region55: #{tpu_custom_call.1} parent=31 // pred_region
          %s671 = ssub.s32 2048, 2048
          %672 = vsyncadd %s663, %s671
          %s673 = smul.addr %s25, 16
          %s674 = sadd.s32 %s24, %s673
          %s675 = smul.addr %s674, 128
          %s676 = scalar_lea.hbm %s3, %s675
          %s677 = sshll.u32 %s666, 4
          %s678 = int_to_ptr.vmem [resolvable:$true] %s677
          %683 = dma.vmem_to_hbm [thread:$0]  %s678, 2048, %s676, %s663, 128, 128, 8
        $region56: #{tpu_custom_call.1} parent=31 // pred_fallthru
          _
      $region32: #{tpu_custom_call.1} parent=5 // pred_fallthru
        _
      %p684 = scmp.le.s32.totalorder 2, %s15
      // Predicated region
      $region57: #{tpu_custom_call.1} parent=5 // pred_check
        %p685 = pneg %p684
      $region58: #{tpu_custom_call.1} parent=5 // pred_check_branch
        %687 = sbr.rel (%p685) target = $region60
      $region59: #{tpu_custom_call.1} parent=5 // pred_region
        %s688 = ssub.s32 %s15, 2
        // Predicated region
        $region61: #{tpu_custom_call.1} parent=59 // pred_check
          %p689 = pneg %p126
        $region62: #{tpu_custom_call.1} parent=59 // pred_check_branch
          %691 = sbr.rel (%p689) target = $region64
        $region63: #{tpu_custom_call.1} parent=59 // pred_region
          %s692 = sand.u32 %s111, 1
          %s693 = scalar_lea.sflag [#allocation7], %s692
          %s694 = sand.u32 %s111, 1
          %s695 = smul.addr %s694, 128
          %s696 = scalar_lea.vmem [#allocation12], %s695
          %697 = dma.done %s693, 2048
        $region64: #{tpu_custom_call.1} parent=59 // pred_fallthru
          _
      $region60: #{tpu_custom_call.1} parent=5 // pred_fallthru
        _
    $region6: #{tpu_custom_call.1} parent=1 // loop_footer
      %s19 = sadd.s32 1, %s15
    $region7: #{tpu_custom_call.1} parent=1 // loop_footer_branch
      %14 = sbr.rel target = $region3
    $region8: #{tpu_custom_call.1} parent=1 // loop_exit
      _
    %698 = vsyncpa [#allocation6], 1
    %s699 = scalar_lea.sflag [#allocation6], 1
    %700 = vsyncpa %s699, 1
    %701 = vsyncpa [#allocation11], 1
    %702 = vsyncpa [#allocation7], 1
    %s703 = scalar_lea.sflag [#allocation7], 1
    %704 = vsyncpa %s703, 1
    %705 = vsyncpa [#allocation8], 1
    %s706 = scalar_lea.sflag [#allocation8], 1
    %707 = vsyncpa %s706, 1

// kernel: tpu_custom_call.1
$region0: #{tpu_custom_call.1}
  #allocation0 [shape = 'u32[]', space=smem, size = 0x4, offset = 0x4, fixed_abs, tag = 'smem constant byte address 0x4 - core index']
  #allocation1 [shape = 'u32[144,128]{1,0:T(1,128)}', space=vmem, size = 0x12000, scoped, tag = 'internal scratch']
  #allocation2 [shape = 'f32[128,128]{1,0:T(8,128)}', space=vmem, size = 0x10000, scoped, tag = 'scratch operand']
  #allocation3 [shape = 'f32[128,128]{1,0:T(8,128)}', space=vmem, size = 0x10000, scoped, tag = 'scratch operand']
  #allocation4 [shape = 'f32[128,128]{1,0:T(8,128)}', space=vmem, size = 0x10000, scoped, tag = 'scratch operand']
  %s0 = inlined_call_operand.hbm [shape: f32[33], index: 0, kind: input, shape index: {}]
  %s1 = inlined_call_operand.hbm [shape: f32[128,128], index: 1, kind: input, shape index: {}]
  %s2 = inlined_call_operand.hbm [shape: f32[128,128], index: 2, kind: input, shape index: {}]
  %s3 = inlined_call_operand.hbm [shape: f32[11,128,128], index: 3, kind: output, shape index: {}]
  %s4 = sld [smem:[#allocation0]]
  $region65: #{tpu_custom_call.1} parent=0
    _
  %s6 = ssub.s32 1, %s4
  %s7 = scalar_select 0, %s6, %s4
  $region1: #{tpu_custom_call.1} parent=0
    #allocation5 [shape = 'u8[512]{0}', space=smem, size = 0x200, scoped, tag = 'input window, operand 0, single buffered']
    #allocation6 [shape = 's32[2]{0}', space=sflag, size = 0x8, scoped, tag = 'scoped memory for tpu_custom_call.1']
    #allocation7 [shape = 's32[2]{0}', space=sflag, size = 0x8, scoped, tag = 'scoped memory for tpu_custom_call.1']
    #allocation8 [shape = 's32[2]{0}', space=sflag, size = 0x8, scoped, tag = 'scoped memory for tpu_custom_call.1']
    #allocation9 [shape = 'u8[65536]{0}', space=vmem, size = 0x10000, scoped, tag = 'input window, operand 1, single buffered']
    #allocation10 [shape = 'u8[65536]{0}', space=vmem, size = 0x10000, scoped, tag = 'input window, operand 2, single buffered']
    #allocation11 [shape = 's32[1]{0}', space=sflag, size = 0x4, scoped, tag = 'scoped memory for tpu_custom_call.1']
    #allocation12 [shape = 'u8[131072]{0}', space=vmem, size = 0x20000, scoped, tag = 'output window, operand 0']
    %8 = vsyncpa [#allocation8], 0
    %9 = vsyncpa [#allocation6], 0
    %10 = vsyncpa [#allocation11], 0
    %11 = vsyncpa [#allocation7], 0
    %s12 = scalar_lea.sflag [#allocation7], 1
    %13 = vsyncpa %s12, 0
    loop: start=0, step=1, limit=13
    $region2: #{tpu_custom_call.1} parent=1 // loop_pre_header
      _
    $region3: #{tpu_custom_call.1} parent=1 // loop_header
      %s15 = sphi 0, %s19
      %p16 = scmp.ge.s32.totalorder %s15, 13
      %s22 = sphi 0, %s34
      %s23 = sphi 0, %s30
      %s24 = sphi 0, %s22
      %s25 = sphi 0, %s23
      %s26 = sphi 0, %s24
      %s27 = sphi 0, %s25
      %s35 = sphi 0, %s35
      %s37 = sphi 0, %s35
      %s38 = sphi 0, %s37
      %s52 = sphi 0, %s38
      %s56 = sphi 0, %s56
      %s58 = sphi 0, %s56
      %s59 = sphi 0, %s58
      %s73 = sphi 0, %s59
      %s79 = sphi 0, %s81
      %s82 = sphi 0, %s79
      %s83 = sphi 0, %s82
      %s99 = sphi 0, %s83
      %s107 = sphi 0, %s109
      %s110 = sphi 0, %s107
      %s111 = sphi 0, %s110
      %s127 = sphi 0, %s111
    $region4: #{tpu_custom_call.1} parent=1 // loop_header_branch
      %18 = sbr.rel (%p16) target = $region8
    $region5: #{tpu_custom_call.1} parent=1 // loop_body
      %s20 = ssub.s32 %s15, 1
      %s21 = ssub.s32 %s15, 2
      %s28 = sadd.s32 1, %s23
      %p29 = scmp.ge.s32.totalorder %s28, 11
      %s30 = scalar_select %p29, 0, %s28
      %s31 = sadd.s32 1, %s22
      %s32 = scalar_select %p29, %s31, %s22
      %p33 = scmp.ge.s32.totalorder %s32, 1
      %s34 = scalar_select %p33, 0, %s32
      %s36 = sadd.s32 %s35, 1
      %p39 = scmp.eq.s32.totalorder %s15, 10
      %p40 = scmp.ne.s32.totalorder %s35, %s37
      %p41 = scmp.eq.s32.totalorder %s15, 0
      %p42 = por %p40, %p41
      %p43 = scmp.ne.s32.totalorder %s35, %s37
      %p44 = scmp.eq.s32.totalorder %s20, 10
      %p45 = por %p43, %p44
      %p46 = scmp.ne.s32.totalorder %s37, %s38
      %p47 = scmp.eq.s32.totalorder %s20, 0
      %p48 = por %p46, %p47
      %p49 = scmp.ne.s32.totalorder %s37, %s38
      %p50 = scmp.eq.s32.totalorder %s21, 10
      %p51 = por %p49, %p50
      %p53 = scmp.ne.s32.totalorder %s38, %s52
      %p54 = scmp.eq.s32.totalorder %s21, 0
      %p55 = por %p53, %p54
      %s57 = sadd.s32 %s56, 1
      %p60 = scmp.eq.s32.totalorder %s15, 10
      %p61 = scmp.ne.s32.totalorder %s56, %s58
      %p62 = scmp.eq.s32.totalorder %s15, 0
      %p63 = por %p61, %p62
      %p64 = scmp.ne.s32.totalorder %s56, %s58
      %p65 = scmp.eq.s32.totalorder %s20, 10
      %p66 = por %p64, %p65
      %p67 = scmp.ne.s32.totalorder %s58, %s59
      %p68 = scmp.eq.s32.totalorder %s20, 0
      %p69 = por %p67, %p68
      %p70 = scmp.ne.s32.totalorder %s58, %s59
      %p71 = scmp.eq.s32.totalorder %s21, 10
      %p72 = por %p70, %p71
      %p74 = scmp.ne.s32.totalorder %s59, %s73
      %p75 = scmp.eq.s32.totalorder %s21, 0
      %p76 = por %p74, %p75
      %s77 = ssub.s32 %s22, %s34
      %p78 = scmp.eq.s32.totalorder %s77, 0
      %s80 = sadd.s32 %s79, 1
      %s81 = scalar_select %p78, %s79, %s80
      %p84 = pneg %p78
      %p85 = scmp.eq.s32.totalorder %s15, 10
      %p86 = por %p84, %p85
      %p87 = scmp.ne.s32.totalorder %s79, %s82
      %p88 = scmp.eq.s32.totalorder %s15, 0
      %p89 = por %p87, %p88
      %p90 = scmp.ne.s32.totalorder %s79, %s82
      %p91 = scmp.eq.s32.totalorder %s20, 10
      %p92 = por %p90, %p91
      %p93 = scmp.ne.s32.totalorder %s82, %s83
      %p94 = scmp.eq.s32.totalorder %s20, 0
      %p95 = por %p93, %p94
      %p96 = scmp.ne.s32.totalorder %s82, %s83
      %p97 = scmp.eq.s32.totalorder %s21, 10
      %p98 = por %p96, %p97
      %p100 = scmp.ne.s32.totalorder %s83, %s99
      %p101 = scmp.eq.s32.totalorder %s21, 0
      %p102 = por %p100, %p101
      %s103 = ssub.s32 %s23, %s30
      %s104 = ssub.s32 %s22, %s34
      %s105 = sor.u32 %s103, %s104
      %p106 = scmp.eq.s32.totalorder %s105, 0
      %s108 = sadd.s32 %s107, 1
      %s109 = scalar_select %p106, %s107, %s108
      %p112 = pneg %p106
      %p113 = scmp.eq.s32.totalorder %s15, 10
      %p114 = por %p112, %p113
      %p115 = scmp.ne.s32.totalorder %s107, %s110
      %p116 = scmp.eq.s32.totalorder %s15, 0
      %p117 = por %p115, %p116
      %p118 = scmp.ne.s32.totalorder %s107, %s110
      %p119 = scmp.eq.s32.totalorder %s20, 10
      %p120 = por %p118, %p119
      %p121 = scmp.ne.s32.totalorder %s110, %s111
      %p122 = scmp.eq.s32.totalorder %s20, 0
      %p123 = por %p121, %p122
      %p124 = scmp.ne.s32.totalorder %s110, %s111
      %p125 = scmp.eq.s32.totalorder %s21, 10
      %p126 = por %p124, %p125
      %p128 = scmp.ne.s32.totalorder %s111, %s127
      %p129 = scmp.eq.s32.totalorder %s21, 0
      %p130 = por %p128, %p129
      %p131 = scmp.le.s32.totalorder 1, %s15
      %p132 = scmp.lt.s32.totalorder %s15, 12
      %p133 = pnand %p131, %p132
      %p134 = pneg %p133
      // Predicated region
      $region9: #{tpu_custom_call.1} parent=5 // pred_check
        _
      $region10: #{tpu_custom_call.1} parent=5 // pred_check_branch
        %136 = sbr.rel (%p133) target = $region12
      $region11: #{tpu_custom_call.1} parent=5 // pred_region
        %s137 = ssub.s32 %s15, 1
        // Predicated region
        $region13: #{tpu_custom_call.1} parent=11 // pred_check
          %p138 = pneg %p48
        $region14: #{tpu_custom_call.1} parent=11 // pred_check_branch
          %140 = sbr.rel (%p138) target = $region16
        $region15: #{tpu_custom_call.1} parent=11 // pred_region
          %s142 = ssub.s32 16, 16
          %143 = vsyncadd [#allocation8], %s142
          %146 = dma.hbm_to_smem %s0, 16, [#allocation5], [#allocation8]
        $region16: #{tpu_custom_call.1} parent=11 // pred_fallthru
          _
        // Predicated region
        $region17: #{tpu_custom_call.1} parent=11 // pred_check
          %p147 = pneg %p69
        $region18: #{tpu_custom_call.1} parent=11 // pred_check_branch
          %149 = sbr.rel (%p147) target = $region20
        $region19: #{tpu_custom_call.1} parent=11 // pred_region
          %s151 = ssub.s32 2048, 2048
          %152 = vsyncadd [#allocation6], %s151
          %s153 = sshll.u32 [#allocation9], 4
          %s154 = int_to_ptr.vmem [resolvable:$true] %s153
          %159 = dma.hbm_to_vmem [thread:$0]  %s1, 2048, %s154, [#allocation6], 128, 128, 8
        $region20: #{tpu_custom_call.1} parent=11 // pred_fallthru
          _
        // Predicated region
        $region21: #{tpu_custom_call.1} parent=11 // pred_check
          %p160 = pneg %p95
        $region22: #{tpu_custom_call.1} parent=11 // pred_check_branch
          %162 = sbr.rel (%p160) target = $region24
        $region23: #{tpu_custom_call.1} parent=11 // pred_region
          %s164 = ssub.s32 2048, 2048
          %165 = vsyncadd [#allocation11], %s164
          %s166 = smul.addr %s24, 128
          %s167 = scalar_lea.hbm %s2, %s166
          %s168 = sshll.u32 [#allocation10], 4
          %s169 = int_to_ptr.vmem [resolvable:$true] %s168
          %174 = dma.hbm_to_vmem [thread:$0]  %s167, 2048, %s169, [#allocation11], 128, 128, 8
        $region24: #{tpu_custom_call.1} parent=11 // pred_fallthru
          _
      $region12: #{tpu_custom_call.1} parent=5 // pred_fallthru
        _
      %p175 = scmp.lt.s32.totalorder %s15, 11
      // Predicated region
      $region25: #{tpu_custom_call.1} parent=5 // pred_check
        %p176 = pneg %p175
      $region26: #{tpu_custom_call.1} parent=5 // pred_check_branch
        %178 = sbr.rel (%p176) target = $region28
      $region27: #{tpu_custom_call.1} parent=5 // pred_region
        _
      $region28: #{tpu_custom_call.1} parent=5 // pred_fallthru
        _
      %p179 = scmp.le.s32.totalorder 1, %s15
      %p180 = scmp.lt.s32.totalorder %s15, 12
      %p181 = pnand %p179, %p180
      %p182 = pneg %p181
      // Predicated region
      $region29: #{tpu_custom_call.1} parent=5 // pred_check
        _
      $region30: #{tpu_custom_call.1} parent=5 // pred_check_branch
        %184 = sbr.rel (%p181) target = $region32
      $region31: #{tpu_custom_call.1} parent=5 // pred_region
        %s185 = ssub.s32 %s15, 1
        // Predicated region
        $region33: #{tpu_custom_call.1} parent=31 // pred_check
          %p186 = pneg %p48
        $region34: #{tpu_custom_call.1} parent=31 // pred_check_branch
          %188 = sbr.rel (%p186) target = $region36
        $region35: #{tpu_custom_call.1} parent=31 // pred_region
          %189 = dma.done [#allocation8], 16
        $region36: #{tpu_custom_call.1} parent=31 // pred_fallthru
          _
        // Predicated region
        $region37: #{tpu_custom_call.1} parent=31 // pred_check
          %p190 = pneg %p69
        $region38: #{tpu_custom_call.1} parent=31 // pred_check_branch
          %192 = sbr.rel (%p190) target = $region40
        $region39: #{tpu_custom_call.1} parent=31 // pred_region
          %193 = dma.done [#allocation6], 2048
        $region40: #{tpu_custom_call.1} parent=31 // pred_fallthru
          _
        // Predicated region
        $region41: #{tpu_custom_call.1} parent=31 // pred_check
          %p194 = pneg %p95
        $region42: #{tpu_custom_call.1} parent=31 // pred_check_branch
          %196 = sbr.rel (%p194) target = $region44
        $region43: #{tpu_custom_call.1} parent=31 // pred_region
          %197 = dma.done [#allocation11], 2048
        $region44: #{tpu_custom_call.1} parent=31 // pred_fallthru
          _
        %198 = sfence
        %p199 = pneg %p48
        %p200 = pneg %p45
        %p201 = pneg %p69
        %p202 = pneg %p66
        %p203 = pneg %p95
        %p204 = pneg %p92
        %p205 = pneg %p123
        %p206 = pneg %p120
        %s207 = sand.u32 %s110, 1
        %s208 = scalar_lea.sflag [#allocation7], %s207
        %s209 = sand.u32 %s110, 1
        %s210 = smul.addr %s209, 128
        %s211 = scalar_lea.vmem [#allocation12], %s210
        %p212 = scmp.eq.s32.totalorder %s25, 0
        // Predicated region
        $region45: #{tpu_custom_call.1} parent=31 // pred_check
          %p213 = pneg %p212
        $region46: #{tpu_custom_call.1} parent=31 // pred_check_branch
          %215 = sbr.rel (%p213) target = $region48
        $region47: #{tpu_custom_call.1} parent=31 // pred_region
          %v216 = vld [vmem:[#allocation10] sm:$0xff]
          %v217 = vld [vmem:[#allocation10 + $0x8] sm:$0xff]
          %v218 = vld [vmem:[#allocation10 + $0x10] sm:$0xff]
          %v219 = vld [vmem:[#allocation10 + $0x18] sm:$0xff]
          %v220 = vld [vmem:[#allocation10 + $0x20] sm:$0xff]
          %v221 = vld [vmem:[#allocation10 + $0x28] sm:$0xff]
          %v222 = vld [vmem:[#allocation10 + $0x30] sm:$0xff]
          %v223 = vld [vmem:[#allocation10 + $0x38] sm:$0xff]
          %v224 = vld [vmem:[#allocation10 + $0x40] sm:$0xff]
          %v225 = vld [vmem:[#allocation10 + $0x48] sm:$0xff]
          %v226 = vld [vmem:[#allocation10 + $0x50] sm:$0xff]
          %v227 = vld [vmem:[#allocation10 + $0x58] sm:$0xff]
          %v228 = vld [vmem:[#allocation10 + $0x60] sm:$0xff]
          %v229 = vld [vmem:[#allocation10 + $0x68] sm:$0xff]
          %v230 = vld [vmem:[#allocation10 + $0x70] sm:$0xff]
          %v231 = vld [vmem:[#allocation10 + $0x78] sm:$0xff]
          %232 = vst [vmem:[#allocation2] sm:$0xff] %v216
          %233 = vst [vmem:[#allocation2 + $0x8] sm:$0xff] %v217
          %234 = vst [vmem:[#allocation2 + $0x10] sm:$0xff] %v218
          %235 = vst [vmem:[#allocation2 + $0x18] sm:$0xff] %v219
          %236 = vst [vmem:[#allocation2 + $0x20] sm:$0xff] %v220
          %237 = vst [vmem:[#allocation2 + $0x28] sm:$0xff] %v221
          %238 = vst [vmem:[#allocation2 + $0x30] sm:$0xff] %v222
          %239 = vst [vmem:[#allocation2 + $0x38] sm:$0xff] %v223
          %240 = vst [vmem:[#allocation2 + $0x40] sm:$0xff] %v224
          %241 = vst [vmem:[#allocation2 + $0x48] sm:$0xff] %v225
          %242 = vst [vmem:[#allocation2 + $0x50] sm:$0xff] %v226
          %243 = vst [vmem:[#allocation2 + $0x58] sm:$0xff] %v227
          %244 = vst [vmem:[#allocation2 + $0x60] sm:$0xff] %v228
          %245 = vst [vmem:[#allocation2 + $0x68] sm:$0xff] %v229
          %246 = vst [vmem:[#allocation2 + $0x70] sm:$0xff] %v230
          %247 = vst [vmem:[#allocation2 + $0x78] sm:$0xff] %v231
          %248 = vst [vmem:[#allocation3] sm:$0xff] 0.0
          %249 = vst [vmem:[#allocation3 + $0x8] sm:$0xff] 0.0
          %250 = vst [vmem:[#allocation3 + $0x10] sm:$0xff] 0.0
          %251 = vst [vmem:[#allocation3 + $0x18] sm:$0xff] 0.0
          %252 = vst [vmem:[#allocation3 + $0x20] sm:$0xff] 0.0
          %253 = vst [vmem:[#allocation3 + $0x28] sm:$0xff] 0.0
          %254 = vst [vmem:[#allocation3 + $0x30] sm:$0xff] 0.0
          %255 = vst [vmem:[#allocation3 + $0x38] sm:$0xff] 0.0
          %256 = vst [vmem:[#allocation3 + $0x40] sm:$0xff] 0.0
          %257 = vst [vmem:[#allocation3 + $0x48] sm:$0xff] 0.0
          %258 = vst [vmem:[#allocation3 + $0x50] sm:$0xff] 0.0
          %259 = vst [vmem:[#allocation3 + $0x58] sm:$0xff] 0.0
          %260 = vst [vmem:[#allocation3 + $0x60] sm:$0xff] 0.0
          %261 = vst [vmem:[#allocation3 + $0x68] sm:$0xff] 0.0
          %262 = vst [vmem:[#allocation3 + $0x70] sm:$0xff] 0.0
          %263 = vst [vmem:[#allocation3 + $0x78] sm:$0xff] 0.0
          %264 = vst [vmem:[#allocation4] sm:$0xff] %v216
          %265 = vst [vmem:[#allocation4 + $0x8] sm:$0xff] %v217
          %266 = vst [vmem:[#allocation4 + $0x10] sm:$0xff] %v218
          %267 = vst [vmem:[#allocation4 + $0x18] sm:$0xff] %v219
          %268 = vst [vmem:[#allocation4 + $0x20] sm:$0xff] %v220
          %269 = vst [vmem:[#allocation4 + $0x28] sm:$0xff] %v221
          %270 = vst [vmem:[#allocation4 + $0x30] sm:$0xff] %v222
          %271 = vst [vmem:[#allocation4 + $0x38] sm:$0xff] %v223
          %272 = vst [vmem:[#allocation4 + $0x40] sm:$0xff] %v224
          %273 = vst [vmem:[#allocation4 + $0x48] sm:$0xff] %v225
          %274 = vst [vmem:[#allocation4 + $0x50] sm:$0xff] %v226
          %275 = vst [vmem:[#allocation4 + $0x58] sm:$0xff] %v227
          %276 = vst [vmem:[#allocation4 + $0x60] sm:$0xff] %v228
          %277 = vst [vmem:[#allocation4 + $0x68] sm:$0xff] %v229
          %278 = vst [vmem:[#allocation4 + $0x70] sm:$0xff] %v230
          %279 = vst [vmem:[#allocation4 + $0x78] sm:$0xff] %v231
          %280 = vst [vmem:[%s211] sm:$0xff] %v216
          %281 = vst [vmem:[%s211 + $0x8] sm:$0xff] %v217
          %282 = vst [vmem:[%s211 + $0x10] sm:$0xff] %v218
          %283 = vst [vmem:[%s211 + $0x18] sm:$0xff] %v219
          %284 = vst [vmem:[%s211 + $0x20] sm:$0xff] %v220
          %285 = vst [vmem:[%s211 + $0x28] sm:$0xff] %v221
          %286 = vst [vmem:[%s211 + $0x30] sm:$0xff] %v222
          %287 = vst [vmem:[%s211 + $0x38] sm:$0xff] %v223
          %288 = vst [vmem:[%s211 + $0x40] sm:$0xff] %v224
          %289 = vst [vmem:[%s211 + $0x48] sm:$0xff] %v225
          %290 = vst [vmem:[%s211 + $0x50] sm:$0xff] %v226
          %291 = vst [vmem:[%s211 + $0x58] sm:$0xff] %v227
          %292 = vst [vmem:[%s211 + $0x60] sm:$0xff] %v228
          %293 = vst [vmem:[%s211 + $0x68] sm:$0xff] %v229
          %294 = vst [vmem:[%s211 + $0x70] sm:$0xff] %v230
          %295 = vst [vmem:[%s211 + $0x78] sm:$0xff] %v231
        $region48: #{tpu_custom_call.1} parent=31 // pred_fallthru
          _
        %p296 = scmp.gt.s32.totalorder %s25, 0
        // Predicated region
        $region49: #{tpu_custom_call.1} parent=31 // pred_check
          %p297 = pneg %p296
        $region50: #{tpu_custom_call.1} parent=31 // pred_check_branch
          %299 = sbr.rel (%p297) target = $region52
        $region51: #{tpu_custom_call.1} parent=31 // pred_region
          %s300 = smul.u32 %s25, 3
          %s301 = sld [smem:[#allocation5 + %s300]]
          %s302 = sadd.s32 %s300, 1
          %s303 = sld [smem:[#allocation5 + %s302]]
          %s304 = sadd.s32 %s300, 2
          %s305 = sld [smem:[#allocation5 + %s304]]
          %v306 = vld [vmem:[#allocation2] sm:$0xff]
          %v307 = vld [vmem:[#allocation2 + $0x8] sm:$0xff]
          %v308 = vld [vmem:[#allocation2 + $0x10] sm:$0xff]
          %v309 = vld [vmem:[#allocation2 + $0x18] sm:$0xff]
          %v310 = vld [vmem:[#allocation2 + $0x20] sm:$0xff]
          %v311 = vld [vmem:[#allocation2 + $0x28] sm:$0xff]
          %v312 = vld [vmem:[#allocation2 + $0x30] sm:$0xff]
          %v313 = vld [vmem:[#allocation2 + $0x38] sm:$0xff]
          %v314 = vld [vmem:[#allocation2 + $0x40] sm:$0xff]
          %v315 = vld [vmem:[#allocation2 + $0x48] sm:$0xff]
          %v316 = vld [vmem:[#allocation2 + $0x50] sm:$0xff]
          %v317 = vld [vmem:[#allocation2 + $0x58] sm:$0xff]
          %v318 = vld [vmem:[#allocation2 + $0x60] sm:$0xff]
          %v319 = vld [vmem:[#allocation2 + $0x68] sm:$0xff]
          %v320 = vld [vmem:[#allocation2 + $0x70] sm:$0xff]
          %v321 = vld [vmem:[#allocation2 + $0x78] sm:$0xff]
          %v322 = vld [vmem:[#allocation9] sm:$0xff]
          %v323 = vld [vmem:[#allocation9 + $0x8] sm:$0xff]
          %v324 = vld [vmem:[#allocation9 + $0x10] sm:$0xff]
          %v325 = vld [vmem:[#allocation9 + $0x18] sm:$0xff]
          %v326 = vld [vmem:[#allocation9 + $0x20] sm:$0xff]
          %v327 = vld [vmem:[#allocation9 + $0x28] sm:$0xff]
          %v328 = vld [vmem:[#allocation9 + $0x30] sm:$0xff]
          %v329 = vld [vmem:[#allocation9 + $0x38] sm:$0xff]
          %v330 = vld [vmem:[#allocation9 + $0x40] sm:$0xff]
          %v331 = vld [vmem:[#allocation9 + $0x48] sm:$0xff]
          %v332 = vld [vmem:[#allocation9 + $0x50] sm:$0xff]
          %v333 = vld [vmem:[#allocation9 + $0x58] sm:$0xff]
          %v334 = vld [vmem:[#allocation9 + $0x60] sm:$0xff]
          %v335 = vld [vmem:[#allocation9 + $0x68] sm:$0xff]
          %v336 = vld [vmem:[#allocation9 + $0x70] sm:$0xff]
          %v337 = vld [vmem:[#allocation9 + $0x78] sm:$0xff]
          %v338 = vld [vmem:[#allocation4] sm:$0xff]
          %v339 = vld [vmem:[#allocation4 + $0x8] sm:$0xff]
          %v340 = vld [vmem:[#allocation4 + $0x10] sm:$0xff]
          %v341 = vld [vmem:[#allocation4 + $0x18] sm:$0xff]
          %v342 = vld [vmem:[#allocation4 + $0x20] sm:$0xff]
          %v343 = vld [vmem:[#allocation4 + $0x28] sm:$0xff]
          %v344 = vld [vmem:[#allocation4 + $0x30] sm:$0xff]
          %v345 = vld [vmem:[#allocation4 + $0x38] sm:$0xff]
          %v346 = vld [vmem:[#allocation4 + $0x40] sm:$0xff]
          %v347 = vld [vmem:[#allocation4 + $0x48] sm:$0xff]
          %v348 = vld [vmem:[#allocation4 + $0x50] sm:$0xff]
          %v349 = vld [vmem:[#allocation4 + $0x58] sm:$0xff]
          %v350 = vld [vmem:[#allocation4 + $0x60] sm:$0xff]
          %v351 = vld [vmem:[#allocation4 + $0x68] sm:$0xff]
          %v352 = vld [vmem:[#allocation4 + $0x70] sm:$0xff]
          %v353 = vld [vmem:[#allocation4 + $0x78] sm:$0xff]
          %354 = vmatprep.subr.mxu0 0.0
          %355 = vmatpush1.msra.mxu0 %v353
          %356 = vmatprep.subr.mxu0 0.0
          %357 = vmatpush1.msra.mxu0 %v352
          %358 = vmatprep.subr.mxu0 0.0
          %359 = vmatpush1.msra.mxu0 %v351
          %360 = vmatprep.subr.mxu0 0.0
          %361 = vmatpush1.msra.mxu0 %v350
          %362 = vmatprep.subr.mxu0 0.0
          %363 = vmatpush1.msra.mxu0 %v349
          %364 = vmatprep.subr.mxu0 0.0
          %365 = vmatpush1.msra.mxu0 %v348
          %366 = vmatprep.subr.mxu0 0.0
          %367 = vmatpush1.msra.mxu0 %v347
          %368 = vmatprep.subr.mxu0 0.0
          %369 = vmatpush1.msra.mxu0 %v346
          %370 = vmatprep.subr.mxu0 0.0
          %371 = vmatpush1.msra.mxu0 %v345
          %372 = vmatprep.subr.mxu0 0.0
          %373 = vmatpush1.msra.mxu0 %v344
          %374 = vmatprep.subr.mxu0 0.0
          %375 = vmatpush1.msra.mxu0 %v343
          %376 = vmatprep.subr.mxu0 0.0
          %377 = vmatpush1.msra.mxu0 %v342
          %378 = vmatprep.subr.mxu0 0.0
          %379 = vmatpush1.msra.mxu0 %v341
          %380 = vmatprep.subr.mxu0 0.0
          %381 = vmatpush1.msra.mxu0 %v340
          %382 = vmatprep.subr.mxu0 0.0
          %383 = vmatpush1.msra.mxu0 %v339
          %384 = vmatprep.subr.mxu0 0.0
          %385 = vmatpush1.msra.mxu0 %v338
          %386 = vmatprep.subr.mxu0 0.0
          %387 = vmatpush2.msra.mxu0 0.0
          %388 = vmatprep.subr.mxu0 0.0
          %389 = vmatpush2.msra.mxu0 0.0
          %390 = vmatprep.subr.mxu0 0.0
          %391 = vmatpush2.msra.mxu0 0.0
          %392 = vmatprep.subr.mxu0 0.0
          %393 = vmatpush2.msra.mxu0 0.0
          %394 = vmatprep.subr.mxu0 0.0
          %395 = vmatpush2.msra.mxu0 0.0
          %396 = vmatprep.subr.mxu0 0.0
          %397 = vmatpush2.msra.mxu0 0.0
          %398 = vmatprep.subr.mxu0 0.0
          %399 = vmatpush2.msra.mxu0 0.0
          %400 = vmatprep.subr.mxu0 0.0
          %401 = vmatpush2.msra.mxu0 0.0
          %402 = vmatprep.subr.mxu0 0.0
          %403 = vmatpush2.msra.mxu0 0.0
          %404 = vmatprep.subr.mxu0 0.0
          %405 = vmatpush2.msra.mxu0 0.0
          %406 = vmatprep.subr.mxu0 0.0
          %407 = vmatpush2.msra.mxu0 0.0
          %408 = vmatprep.subr.mxu0 0.0
          %409 = vmatpush2.msra.mxu0 0.0
          %410 = vmatprep.subr.mxu0 0.0
          %411 = vmatpush2.msra.mxu0 0.0
          %412 = vmatprep.subr.mxu0 0.0
          %413 = vmatpush2.msra.mxu0 0.0
          %414 = vmatprep.subr.mxu0 0.0
          %415 = vmatpush2.msra.mxu0 0.0
          %416 = vmatprep.subr.mxu0 0.0
          %417 = vmatpush2.msra.mxu0 0.0
          %418 = vmatprep.mubr.f32.mxu0 0.0
          %419 = vmatmul.mubr.f32.gmra.mxu0 %v322
          %v420 = vpop.f32.mrf.mxu0
          %v421 = vadd.f32 0.0, %v420
          %v422 = vpop.f32.mrf.mxu0
          %423 = vmatprep.mubr.f32.mxu0 0.0
          %424 = vmatmul.mubr.f32.gmra.mxu0 %v323
          %v425 = vpop.f32.mrf.mxu0
          %v426 = vadd.f32 0.0, %v425
          %v427 = vpop.f32.mrf.mxu0
          %428 = vmatprep.mubr.f32.mxu0 0.0
          %429 = vmatmul.mubr.f32.gmra.mxu0 %v324
          %v430 = vpop.f32.mrf.mxu0
          %v431 = vadd.f32 0.0, %v430
          %v432 = vpop.f32.mrf.mxu0
          %433 = vmatprep.mubr.f32.mxu0 0.0
          %434 = vmatmul.mubr.f32.gmra.mxu0 %v325
          %v435 = vpop.f32.mrf.mxu0
          %v436 = vadd.f32 0.0, %v435
          %v437 = vpop.f32.mrf.mxu0
          %438 = vmatprep.mubr.f32.mxu0 0.0
          %439 = vmatmul.mubr.f32.gmra.mxu0 %v326
          %v440 = vpop.f32.mrf.mxu0
          %v441 = vadd.f32 0.0, %v440
          %v442 = vpop.f32.mrf.mxu0
          %443 = vmatprep.mubr.f32.mxu0 0.0
          %444 = vmatmul.mubr.f32.gmra.mxu0 %v327
          %v445 = vpop.f32.mrf.mxu0
          %v446 = vadd.f32 0.0, %v445
          %v447 = vpop.f32.mrf.mxu0
          %448 = vmatprep.mubr.f32.mxu0 0.0
          %449 = vmatmul.mubr.f32.gmra.mxu0 %v328
          %v450 = vpop.f32.mrf.mxu0
          %v451 = vadd.f32 0.0, %v450
          %v452 = vpop.f32.mrf.mxu0
          %453 = vmatprep.mubr.f32.mxu0 0.0
          %454 = vmatmul.mubr.f32.gmra.mxu0 %v329
          %v455 = vpop.f32.mrf.mxu0
          %v456 = vadd.f32 0.0, %v455
          %v457 = vpop.f32.mrf.mxu0
          %458 = vmatprep.mubr.f32.mxu0 0.0
          %459 = vmatmul.mubr.f32.gmra.mxu0 %v330
          %v460 = vpop.f32.mrf.mxu0
          %v461 = vadd.f32 0.0, %v460
          %v462 = vpop.f32.mrf.mxu0
          %463 = vmatprep.mubr.f32.mxu0 0.0
          %464 = vmatmul.mubr.f32.gmra.mxu0 %v331
          %v465 = vpop.f32.mrf.mxu0
          %v466 = vadd.f32 0.0, %v465
          %v467 = vpop.f32.mrf.mxu0
          %468 = vmatprep.mubr.f32.mxu0 0.0
          %469 = vmatmul.mubr.f32.gmra.mxu0 %v332
          %v470 = vpop.f32.mrf.mxu0
          %v471 = vadd.f32 0.0, %v470
          %v472 = vpop.f32.mrf.mxu0
          %473 = vmatprep.mubr.f32.mxu0 0.0
          %474 = vmatmul.mubr.f32.gmra.mxu0 %v333
          %v475 = vpop.f32.mrf.mxu0
          %v476 = vadd.f32 0.0, %v475
          %v477 = vpop.f32.mrf.mxu0
          %478 = vmatprep.mubr.f32.mxu0 0.0
          %479 = vmatmul.mubr.f32.gmra.mxu0 %v334
          %v480 = vpop.f32.mrf.mxu0
          %v481 = vadd.f32 0.0, %v480
          %v482 = vpop.f32.mrf.mxu0
          %483 = vmatprep.mubr.f32.mxu0 0.0
          %484 = vmatmul.mubr.f32.gmra.mxu0 %v335
          %v485 = vpop.f32.mrf.mxu0
          %v486 = vadd.f32 0.0, %v485
          %v487 = vpop.f32.mrf.mxu0
          %488 = vmatprep.mubr.f32.mxu0 0.0
          %489 = vmatmul.mubr.f32.gmra.mxu0 %v336
          %v490 = vpop.f32.mrf.mxu0
          %v491 = vadd.f32 0.0, %v490
          %v492 = vpop.f32.mrf.mxu0
          %493 = vmatprep.mubr.f32.mxu0 0.0
          %494 = vmatmul.mubr.f32.gmra.mxu0 %v337
          %v495 = vpop.f32.mrf.mxu0
          %v496 = vadd.f32 0.0, %v495
          %v497 = vpop.f32.mrf.mxu0
          %498 = vdwg.mxu0
          %v499 = vstv %s301
          %v500 = vmul.f32 %v499, %v421
          %v501 = vmul.f32 %v499, %v426
          %v502 = vmul.f32 %v499, %v431
          %v503 = vmul.f32 %v499, %v436
          %v504 = vmul.f32 %v499, %v441
          %v505 = vmul.f32 %v499, %v446
          %v506 = vmul.f32 %v499, %v451
          %v507 = vmul.f32 %v499, %v456
          %v508 = vmul.f32 %v499, %v461
          %v509 = vmul.f32 %v499, %v466
          %v510 = vmul.f32 %v499, %v471
          %v511 = vmul.f32 %v499, %v476
          %v512 = vmul.f32 %v499, %v481
          %v513 = vmul.f32 %v499, %v486
          %v514 = vmul.f32 %v499, %v491
          %v515 = vmul.f32 %v499, %v496
          %v516 = vstv %s303
          %v517 = vmul.f32 %v516, %v306
          %v518 = vmul.f32 %v516, %v307
          %v519 = vmul.f32 %v516, %v308
          %v520 = vmul.f32 %v516, %v309
          %v521 = vmul.f32 %v516, %v310
          %v522 = vmul.f32 %v516, %v311
          %v523 = vmul.f32 %v516, %v312
          %v524 = vmul.f32 %v516, %v313
          %v525 = vmul.f32 %v516, %v314
          %v526 = vmul.f32 %v516, %v315
          %v527 = vmul.f32 %v516, %v316
          %v528 = vmul.f32 %v516, %v317
          %v529 = vmul.f32 %v516, %v318
          %v530 = vmul.f32 %v516, %v319
          %v531 = vmul.f32 %v516, %v320
          %v532 = vmul.f32 %v516, %v321
          %v533 = vadd.f32 %v500, %v517
          %v534 = vadd.f32 %v501, %v518
          %v535 = vadd.f32 %v502, %v519
          %v536 = vadd.f32 %v503, %v520
          %v537 = vadd.f32 %v504, %v521
          %v538 = vadd.f32 %v505, %v522
          %v539 = vadd.f32 %v506, %v523
          %v540 = vadd.f32 %v507, %v524
          %v541 = vadd.f32 %v508, %v525
          %v542 = vadd.f32 %v509, %v526
          %v543 = vadd.f32 %v510, %v527
          %v544 = vadd.f32 %v511, %v528
          %v545 = vadd.f32 %v512, %v529
          %v546 = vadd.f32 %v513, %v530
          %v547 = vadd.f32 %v514, %v531
          %v548 = vadd.f32 %v515, %v532
          %v549 = vld [vmem:[#allocation3] sm:$0xff]
          %v550 = vld [vmem:[#allocation3 + $0x8] sm:$0xff]
          %v551 = vld [vmem:[#allocation3 + $0x10] sm:$0xff]
          %v552 = vld [vmem:[#allocation3 + $0x18] sm:$0xff]
          %v553 = vld [vmem:[#allocation3 + $0x20] sm:$0xff]
          %v554 = vld [vmem:[#allocation3 + $0x28] sm:$0xff]
          %v555 = vld [vmem:[#allocation3 + $0x30] sm:$0xff]
          %v556 = vld [vmem:[#allocation3 + $0x38] sm:$0xff]
          %v557 = vld [vmem:[#allocation3 + $0x40] sm:$0xff]
          %v558 = vld [vmem:[#allocation3 + $0x48] sm:$0xff]
          %v559 = vld [vmem:[#allocation3 + $0x50] sm:$0xff]
          %v560 = vld [vmem:[#allocation3 + $0x58] sm:$0xff]
          %v561 = vld [vmem:[#allocation3 + $0x60] sm:$0xff]
          %v562 = vld [vmem:[#allocation3 + $0x68] sm:$0xff]
          %v563 = vld [vmem:[#allocation3 + $0x70] sm:$0xff]
          %v564 = vld [vmem:[#allocation3 + $0x78] sm:$0xff]
          %v565 = vstv %s305
          %v566 = vmul.f32 %v565, %v549
          %v567 = vmul.f32 %v565, %v550
          %v568 = vmul.f32 %v565, %v551
          %v569 = vmul.f32 %v565, %v552
          %v570 = vmul.f32 %v565, %v553
          %v571 = vmul.f32 %v565, %v554
          %v572 = vmul.f32 %v565, %v555
          %v573 = vmul.f32 %v565, %v556
          %v574 = vmul.f32 %v565, %v557
          %v575 = vmul.f32 %v565, %v558
          %v576 = vmul.f32 %v565, %v559
          %v577 = vmul.f32 %v565, %v560
          %v578 = vmul.f32 %v565, %v561
          %v579 = vmul.f32 %v565, %v562
          %v580 = vmul.f32 %v565, %v563
          %v581 = vmul.f32 %v565, %v564
          %v582 = vadd.f32 %v533, %v566
          %v583 = vadd.f32 %v534, %v567
          %v584 = vadd.f32 %v535, %v568
          %v585 = vadd.f32 %v536, %v569
          %v586 = vadd.f32 %v537, %v570
          %v587 = vadd.f32 %v538, %v571
          %v588 = vadd.f32 %v539, %v572
          %v589 = vadd.f32 %v540, %v573
          %v590 = vadd.f32 %v541, %v574
          %v591 = vadd.f32 %v542, %v575
          %v592 = vadd.f32 %v543, %v576
          %v593 = vadd.f32 %v544, %v577
          %v594 = vadd.f32 %v545, %v578
          %v595 = vadd.f32 %v546, %v579
          %v596 = vadd.f32 %v547, %v580
          %v597 = vadd.f32 %v548, %v581
          %598 = vst [vmem:[#allocation3] sm:$0xff] %v306
          %599 = vst [vmem:[#allocation3 + $0x8] sm:$0xff] %v307
          %600 = vst [vmem:[#allocation3 + $0x10] sm:$0xff] %v308
          %601 = vst [vmem:[#allocation3 + $0x18] sm:$0xff] %v309
          %602 = vst [vmem:[#allocation3 + $0x20] sm:$0xff] %v310
          %603 = vst [vmem:[#allocation3 + $0x28] sm:$0xff] %v311
          %604 = vst [vmem:[#allocation3 + $0x30] sm:$0xff] %v312
          %605 = vst [vmem:[#allocation3 + $0x38] sm:$0xff] %v313
          %606 = vst [vmem:[#allocation3 + $0x40] sm:$0xff] %v314
          %607 = vst [vmem:[#allocation3 + $0x48] sm:$0xff] %v315
          %608 = vst [vmem:[#allocation3 + $0x50] sm:$0xff] %v316
          %609 = vst [vmem:[#allocation3 + $0x58] sm:$0xff] %v317
          %610 = vst [vmem:[#allocation3 + $0x60] sm:$0xff] %v318
          %611 = vst [vmem:[#allocation3 + $0x68] sm:$0xff] %v319
          %612 = vst [vmem:[#allocation3 + $0x70] sm:$0xff] %v320
          %613 = vst [vmem:[#allocation3 + $0x78] sm:$0xff] %v321
          %614 = vst [vmem:[#allocation2] sm:$0xff] %v582
          %615 = vst [vmem:[#allocation2 + $0x8] sm:$0xff] %v583
          %616 = vst [vmem:[#allocation2 + $0x10] sm:$0xff] %v584
          %617 = vst [vmem:[#allocation2 + $0x18] sm:$0xff] %v585
          %618 = vst [vmem:[#allocation2 + $0x20] sm:$0xff] %v586
          %619 = vst [vmem:[#allocation2 + $0x28] sm:$0xff] %v587
          %620 = vst [vmem:[#allocation2 + $0x30] sm:$0xff] %v588
          %621 = vst [vmem:[#allocation2 + $0x38] sm:$0xff] %v589
          %622 = vst [vmem:[#allocation2 + $0x40] sm:$0xff] %v590
          %623 = vst [vmem:[#allocation2 + $0x48] sm:$0xff] %v591
          %624 = vst [vmem:[#allocation2 + $0x50] sm:$0xff] %v592
          %625 = vst [vmem:[#allocation2 + $0x58] sm:$0xff] %v593
          %626 = vst [vmem:[#allocation2 + $0x60] sm:$0xff] %v594
          %627 = vst [vmem:[#allocation2 + $0x68] sm:$0xff] %v595
          %628 = vst [vmem:[#allocation2 + $0x70] sm:$0xff] %v596
          %629 = vst [vmem:[#allocation2 + $0x78] sm:$0xff] %v597
          %630 = vst [vmem:[#allocation4] sm:$0xff] %v582
          %631 = vst [vmem:[#allocation4 + $0x8] sm:$0xff] %v583
          %632 = vst [vmem:[#allocation4 + $0x10] sm:$0xff] %v584
          %633 = vst [vmem:[#allocation4 + $0x18] sm:$0xff] %v585
          %634 = vst [vmem:[#allocation4 + $0x20] sm:$0xff] %v586
          %635 = vst [vmem:[#allocation4 + $0x28] sm:$0xff] %v587
          %636 = vst [vmem:[#allocation4 + $0x30] sm:$0xff] %v588
          %637 = vst [vmem:[#allocation4 + $0x38] sm:$0xff] %v589
          %638 = vst [vmem:[#allocation4 + $0x40] sm:$0xff] %v590
          %639 = vst [vmem:[#allocation4 + $0x48] sm:$0xff] %v591
          %640 = vst [vmem:[#allocation4 + $0x50] sm:$0xff] %v592
          %641 = vst [vmem:[#allocation4 + $0x58] sm:$0xff] %v593
          %642 = vst [vmem:[#allocation4 + $0x60] sm:$0xff] %v594
          %643 = vst [vmem:[#allocation4 + $0x68] sm:$0xff] %v595
          %644 = vst [vmem:[#allocation4 + $0x70] sm:$0xff] %v596
          %645 = vst [vmem:[#allocation4 + $0x78] sm:$0xff] %v597
          %646 = vst [vmem:[%s211] sm:$0xff] %v582
          %647 = vst [vmem:[%s211 + $0x8] sm:$0xff] %v583
          %648 = vst [vmem:[%s211 + $0x10] sm:$0xff] %v584
          %649 = vst [vmem:[%s211 + $0x18] sm:$0xff] %v585
          %650 = vst [vmem:[%s211 + $0x20] sm:$0xff] %v586
          %651 = vst [vmem:[%s211 + $0x28] sm:$0xff] %v587
          %652 = vst [vmem:[%s211 + $0x30] sm:$0xff] %v588
          %653 = vst [vmem:[%s211 + $0x38] sm:$0xff] %v589
          %654 = vst [vmem:[%s211 + $0x40] sm:$0xff] %v590
          %655 = vst [vmem:[%s211 + $0x48] sm:$0xff] %v591
          %656 = vst [vmem:[%s211 + $0x50] sm:$0xff] %v592
          %657 = vst [vmem:[%s211 + $0x58] sm:$0xff] %v593
          %658 = vst [vmem:[%s211 + $0x60] sm:$0xff] %v594
          %659 = vst [vmem:[%s211 + $0x68] sm:$0xff] %v595
          %660 = vst [vmem:[%s211 + $0x70] sm:$0xff] %v596
          %661 = vst [vmem:[%s211 + $0x78] sm:$0xff] %v597
        $region52: #{tpu_custom_call.1} parent=31 // pred_fallthru
          _
        %s662 = sand.u32 %s110, 1
        %s663 = scalar_lea.sflag [#allocation7], %s662
        %s664 = sand.u32 %s110, 1
        %s665 = smul.addr %s664, 128
        %s666 = scalar_lea.vmem [#allocation12], %s665
        // Predicated region
        $region53: #{tpu_custom_call.1} parent=31 // pred_check
          %p667 = pneg %p120
        $region54: #{tpu_custom_call.1} parent=31 // pred_check_branch
          %669 = sbr.rel (%p667) target = $region56
        $region55: #{tpu_custom_call.1} parent=31 // pred_region
          %s671 = ssub.s32 2048, 2048
          %672 = vsyncadd %s663, %s671
          %s673 = smul.addr %s25, 16
          %s674 = sadd.s32 %s24, %s673
          %s675 = smul.addr %s674, 128
          %s676 = scalar_lea.hbm %s3, %s675
          %s677 = sshll.u32 %s666, 4
          %s678 = int_to_ptr.vmem [resolvable:$true] %s677
          %683 = dma.vmem_to_hbm [thread:$0]  %s678, 2048, %s676, %s663, 128, 128, 8
        $region56: #{tpu_custom_call.1} parent=31 // pred_fallthru
          _
      $region32: #{tpu_custom_call.1} parent=5 // pred_fallthru
        _
      %p684 = scmp.le.s32.totalorder 2, %s15
      // Predicated region
      $region57: #{tpu_custom_call.1} parent=5 // pred_check
        %p685 = pneg %p684
      $region58: #{tpu_custom_call.1} parent=5 // pred_check_branch
        %687 = sbr.rel (%p685) target = $region60
      $region59: #{tpu_custom_call.1} parent=5 // pred_region
        %s688 = ssub.s32 %s15, 2
        // Predicated region
        $region61: #{tpu_custom_call.1} parent=59 // pred_check
          %p689 = pneg %p126
        $region62: #{tpu_custom_call.1} parent=59 // pred_check_branch
          %691 = sbr.rel (%p689) target = $region64
        $region63: #{tpu_custom_call.1} parent=59 // pred_region
          %s692 = sand.u32 %s111, 1
          %s693 = scalar_lea.sflag [#allocation7], %s692
          %s694 = sand.u32 %s111, 1
          %s695 = smul.addr %s694, 128
          %s696 = scalar_lea.vmem [#allocation12], %s695
          %697 = dma.done %s693, 2048
        $region64: #{tpu_custom_call.1} parent=59 // pred_fallthru
          _
      $region60: #{tpu_custom_call.1} parent=5 // pred_fallthru
        _
    $region6: #{tpu_custom_call.1} parent=1 // loop_footer
      %s19 = sadd.s32 1, %s15
    $region7: #{tpu_custom_call.1} parent=1 // loop_footer_branch
      %14 = sbr.rel target = $region3
    $region8: #{tpu_custom_call.1} parent=1 // loop_exit
      _
    %698 = vsyncpa [#allocation6], 1
    %s699 = scalar_lea.sflag [#allocation6], 1
    %700 = vsyncpa %s699, 1
    %701 = vsyncpa [#allocation11], 1
    %702 = vsyncpa [#allocation7], 1
    %s703 = scalar_lea.sflag [#allocation7], 1
    %704 = vsyncpa %s703, 1
    %705 = vsyncpa [#allocation8], 1
    %s706 = scalar_lea.sflag [#allocation8], 1
    %707 = vsyncpa %s706, 1

</llo_original>
